<compile_context>
chip_gen: v5e
topology: v5e:2x2
jax: 0.10.0
libtpu: 0.0.40
codegen_flags: <defaults>
</compile_context>

<pallas_src>
import jax
import jax.numpy as jnp
import numpy as np
from jax import lax
from jax.experimental import pallas as pl
from jax.experimental.pallas import tpu as pltpu

_BN_EPS = 1e-5


def _dsconv_bn_relu(inp, pad_ref, dw_w, dw_b, pw_w, pw_b, gamma, beta):
    """Depthwise 3x3 (pad=1) -> pointwise 1x1 -> folded BatchNorm(batch stats) -> ReLU.

    inp:     (N, Hp, Wp, C) f32 value
    pad_ref: shared VMEM scratch (N, Hp+2, Wpad, Cmax) with the 1-px halo already zeroed
    dw_w: (9, C)  tap k = 3*di + dj      dw_b: (1, C)
    pw_w: (C, Co)                        pw_b / gamma / beta: (1, Co)
    """
    N, Hp, Wp, C = inp.shape
    Co = pw_w.shape[1]

    # Write only the interior of the shared scratch; halo strips are already zero.
    pad_ref[:, 1:Hp + 1, 1:Wp + 1, :C] = inp

    # Depthwise 3x3 conv (cross-correlation, like PyTorch): 9 per-channel FMAs on the VPU.
    # Center tap comes straight from the in-register value (no VMEM round-trip).
    acc = inp * dw_w[4].reshape(1, 1, 1, C)
    for di in range(3):
        for dj in range(3):
            if di == 1 and dj == 1:
                continue
            tap = dw_w[3 * di + dj].reshape(1, 1, 1, C)
            acc = acc + pad_ref[:, di:di + Hp, dj:dj + Wp, :C] * tap
    acc = acc + dw_b.reshape(1, 1, 1, C)

    # Pointwise 1x1 conv == matmul over the channel axis (MXU).
    m = acc.reshape(-1, C)                                   # (M, C), M = N*Hp*Wp
    y = jnp.dot(m, pw_w, preferred_element_type=jnp.float32) + pw_b

    # BatchNorm2d (training-mode batch stats), single pass + folded affine:
    #   sum / sum-of-squares via ones @ y (MXU is otherwise idle here),
    #   then y_hat = y * scale + shift (one FMA per element) and ReLU.
    M = m.shape[0]
    ones = jnp.ones((1, M), jnp.float32)
    s1 = jnp.dot(ones, y, preferred_element_type=jnp.float32)        # (1, Co) sum
    s2 = jnp.dot(ones, y * y, preferred_element_type=jnp.float32)    # (1, Co) sum of squares
    inv_m = 1.0 / M
    mean = s1 * inv_m
    var = s2 * inv_m - mean * mean                                   # biased variance, f32 accum
    scale = gamma * lax.rsqrt(var + _BN_EPS)
    shift = beta - mean * scale
    y = jnp.maximum(y * scale + shift, 0.0)
    return y.reshape(N, Hp, Wp, Co)


def _ds_down_kernel(xs_ref,
                    dw1_ref, db1_ref, pw1_ref, pb1_ref, g1_ref, b1_ref,
                    dw2_ref, db2_ref, pw2_ref, pb2_ref, g2_ref, b2_ref,
                    out_ref, pad_ref):
    # xs_ref: (4, N, Hp, Wp, Cin) -- the 4 positions of every 2x2 pooling window.
    # MaxPool2d(2): elementwise max of the 4 window-position slabs (no scratch needed).
    pooled = jnp.maximum(jnp.maximum(xs_ref[0], xs_ref[1]),
                         jnp.maximum(xs_ref[2], xs_ref[3]))          # (N, Hp, Wp, Cin)
    N, Hp, Wp, _ = pooled.shape
    Cmax = pad_ref.shape[-1]

    # Zero ONLY the 1-pixel halo of the shared padded scratch (once, for both blocks).
    # The interior is fully overwritten by each block; columns >= Wp+2 are never read.
    pad_ref[:, 0:1, 0:Wp + 2, :] = jnp.zeros((N, 1, Wp + 2, Cmax), jnp.float32)
    pad_ref[:, Hp + 1:Hp + 2, 0:Wp + 2, :] = jnp.zeros((N, 1, Wp + 2, Cmax), jnp.float32)
    pad_ref[:, 1:Hp + 1, 0:1, :] = jnp.zeros((N, Hp, 1, Cmax), jnp.float32)
    pad_ref[:, 1:Hp + 1, Wp + 1:Wp + 2, :] = jnp.zeros((N, Hp, 1, Cmax), jnp.float32)

    h = _dsconv_bn_relu(pooled, pad_ref,
                        dw1_ref[...], db1_ref[...], pw1_ref[...], pb1_ref[...],
                        g1_ref[...], b1_ref[...])
    out_ref[...] = _dsconv_bn_relu(h, pad_ref,
                                   dw2_ref[...], db2_ref[...], pw2_ref[...], pb2_ref[...],
                                   g2_ref[...], b2_ref[...])


def _tile_padded_bytes(shape, dtype_bytes=4):
    """f32 bytes of `shape` with the last two dims padded to (8, 128) VMEM tiles."""
    s = list(shape)
    if len(s) >= 2:
        s[-1] = -(-s[-1] // 128) * 128
        s[-2] = -(-s[-2] // 8) * 8
    n = dtype_bytes
    for d in s:
        n *= int(d)
    return n


def ds_down_block(x_nchw, params):
    """DSDownBlock forward. x_nchw: (N, Cin, H, W) -> (N, Cout, H/2, W/2)."""
    N, Cin, H, W = x_nchw.shape
    assert H % 2 == 0 and W % 2 == 0
    Hp, Wp = H // 2, W // 2
    Cmid = params["pw1_w"].shape[1]
    Cout = params["pw2_w"].shape[1]
    Cmax = max(Cin, Cmid)
    Wpad = -(-(Wp + 2) // 8) * 8          # pad scratch W to a multiple of 8 sublanes

    # Single fused rearrangement: NCHW -> (4, N, Hp, Wp, Cin) pooling-window slabs.
    # (One materialized transpose instead of NCHW->NHWC + a second unfold transpose.)
    xs = (x_nchw.astype(jnp.float32)
          .reshape(N, Cin, Hp, 2, Wp, 2)
          .transpose(3, 5, 0, 2, 4, 1)
          .reshape(4, N, Hp, Wp, Cin))

    vmem = pl.BlockSpec(memory_space=pltpu.MemorySpace.VMEM)
    args = (xs,
            params["dw1_w"], params["dw1_b"], params["pw1_w"], params["pw1_b"],
            params["bn1_g"], params["bn1_b"],
            params["dw2_w"], params["dw2_b"], params["pw2_w"], params["pw2_b"],
            params["bn2_g"], params["bn2_b"])

    # Explicit VMEM budget with headroom (clamped so it is valid on v7x's 64 MiB too).
    est = (_tile_padded_bytes((4, N, Hp, Wp, Cin))
           + _tile_padded_bytes((N, Hp, Wp, Cout))
           + _tile_padded_bytes((N, Hp + 2, Wpad, Cmax))
           + 6 * _tile_padded_bytes((N * Hp * Wp, max(Cmid, Cout))))
    vmem_limit = int(min(64 * 2 ** 20, max(32 * 2 ** 20, 2 * est)))

    # Advisory cost estimate for the XLA scheduler.
    M = N * Hp * Wp
    flops = 3 * 4 * M * Cin  # maxpool compares
    for ci, co in ((Cin, Cmid), (Cmid, Cout)):
        flops += 2 * 9 * M * ci        # depthwise
        flops += 2 * M * ci * co       # pointwise
        flops += 2 * 2 * M * co        # BN sum / sumsq dots
        flops += 4 * M * co            # BN apply + ReLU
    n_param = sum(int(p.size) for p in params.values())
    cost = pl.CostEstimate(flops=int(flops),
                           transcendentals=int(Cmid + Cout),
                           bytes_accessed=int(4 * (int(xs.size) + M * Cout + n_param)))

    out_nhwc = pl.pallas_call(
        _ds_down_kernel,
        out_shape=jax.ShapeDtypeStruct((N, Hp, Wp, Cout), jnp.float32),
        in_specs=[vmem] * len(args),
        out_specs=vmem,
        scratch_shapes=[
            # ONE shared padded buffer for both DSConv blocks (peak = max, not sum).
            pltpu.VMEM((N, Hp + 2, Wpad, Cmax), jnp.float32),
        ],
        compiler_params=pltpu.CompilerParams(vmem_limit_bytes=vmem_limit),
        cost_estimate=cost,
    )(*args)

    return jnp.transpose(out_nhwc, (0, 3, 1, 2))  # NHWC -> NCHW


def init_params(key, in_channels, out_channels):
    mid = out_channels  # DoubleConvDS default: mid_channels = out_channels
    ks = jax.random.split(key, 12)
    n = lambda k, s, sc=0.1: sc * jax.random.normal(k, s, jnp.float32)
    return dict(
        dw1_w=n(ks[0], (9, in_channels)),        dw1_b=n(ks[1], (1, in_channels)),
        pw1_w=n(ks[2], (in_channels, mid)),      pw1_b=n(ks[3], (1, mid)),
        bn1_g=1.0 + n(ks[4], (1, mid)),          bn1_b=n(ks[5], (1, mid)),
        dw2_w=n(ks[6], (9, mid)),                dw2_b=n(ks[7], (1, mid)),
        pw2_w=n(ks[8], (mid, out_channels)),     pw2_b=n(ks[9], (1, out_channels)),
        bn2_g=1.0 + n(ks[10], (1, out_channels)), bn2_b=n(ks[11], (1, out_channels)),
    )


def reference(x_nchw, params):
    """Pure-JAX reference (lax convs) mirroring the PyTorch module."""
    p = lax.reduce_window(x_nchw, -jnp.inf, lax.max, (1, 1, 2, 2), (1, 1, 2, 2), "VALID")

    def block(h, dw_w, dw_b, pw_w, pw_b, g, b):
        C = h.shape[1]
        Co = pw_w.shape[1]
        w_dw = dw_w.T.reshape(C, 1, 3, 3)
        h = lax.conv_general_dilated(h, w_dw, (1, 1), ((1, 1), (1, 1)),
                                     feature_group_count=C,
                                     dimension_numbers=("NCHW", "OIHW", "NCHW"))
        h = h + dw_b.reshape(1, C, 1, 1)
        w_pw = pw_w.T.reshape(Co, C, 1, 1)
        h = lax.conv_general_dilated(h, w_pw, (1, 1), ((0, 0), (0, 0)),
                                     dimension_numbers=("NCHW", "OIHW", "NCHW"))
        h = h + pw_b.reshape(1, Co, 1, 1)
        mean = jnp.mean(h, axis=(0, 2, 3), keepdims=True)
        var = jnp.mean((h - mean) ** 2, axis=(0, 2, 3), keepdims=True)
        h = (h - mean) * lax.rsqrt(var + _BN_EPS)
        h = h * g.reshape(1, Co, 1, 1) + b.reshape(1, Co, 1, 1)
        return jnp.maximum(h, 0.0)

    h = block(p, params["dw1_w"], params["dw1_b"], params["pw1_w"], params["pw1_b"],
              params["bn1_g"], params["bn1_b"])
    h = block(h, params["dw2_w"], params["dw2_b"], params["pw2_w"], params["pw2_b"],
              params["bn2_g"], params["bn2_b"])
    return h


if __name__ == "__main__":
    key = jax.random.PRNGKey(0)
    kx, kp = jax.random.split(key)
    in_channels, out_channels = 4, 8
    x = jax.random.normal(kx, (2, in_channels, 16, 16), jnp.float32)
    params = init_params(kp, in_channels, out_channels)

    out = jax.block_until_ready(ds_down_block(x, params))
    ref = jax.block_until_ready(reference(x, params))

    assert out.shape == (2, out_channels, 8, 8)
    np.testing.assert_allclose(np.asarray(out), np.asarray(ref), rtol=2e-4, atol=2e-4)
    print("KERNEL_OK")
</pallas_src>

<mosaic_0001>
module attributes {stable_mosaic.version = 11 : i64} {
  func.func @_ds_down_kernel(%arg0: memref<4x2x8x8x4xf32, #tpu.memory_space<vmem>>, %arg1: memref<9x4xf32, #tpu.memory_space<vmem>>, %arg2: memref<1x4xf32, #tpu.memory_space<vmem>>, %arg3: memref<4x8xf32, #tpu.memory_space<vmem>>, %arg4: memref<1x8xf32, #tpu.memory_space<vmem>>, %arg5: memref<1x8xf32, #tpu.memory_space<vmem>>, %arg6: memref<1x8xf32, #tpu.memory_space<vmem>>, %arg7: memref<9x8xf32, #tpu.memory_space<vmem>>, %arg8: memref<1x8xf32, #tpu.memory_space<vmem>>, %arg9: memref<8x8xf32, #tpu.memory_space<vmem>>, %arg10: memref<1x8xf32, #tpu.memory_space<vmem>>, %arg11: memref<1x8xf32, #tpu.memory_space<vmem>>, %arg12: memref<1x8xf32, #tpu.memory_space<vmem>>, %arg13: memref<2x8x8x8xf32, #tpu.memory_space<vmem>>, %arg14: memref<2x10x16x8xf32, #tpu.memory_space<vmem>>) attributes {dimension_semantics = [], scalar_prefetch = 0 : i64, scratch_operands = 1 : i64, tpu.core_type = #tpu.core_type<tc>} {
    %c0 = arith.constant 0 : index
    %c0_0 = arith.constant 0 : index
    %c0_1 = arith.constant 0 : index
    %c0_2 = arith.constant 0 : index
    %c0_3 = arith.constant 0 : index
    %0 = vector.load %arg0[%c0, %c0_0, %c0_1, %c0_2, %c0_3] : memref<4x2x8x8x4xf32, #tpu.memory_space<vmem>>, vector<1x2x8x8x4xf32>
    %1 = vector.shape_cast %0 : vector<1x2x8x8x4xf32> to vector<2x8x8x4xf32>
    %c1 = arith.constant 1 : index
    %c0_4 = arith.constant 0 : index
    %c0_5 = arith.constant 0 : index
    %c0_6 = arith.constant 0 : index
    %c0_7 = arith.constant 0 : index
    %2 = vector.load %arg0[%c1, %c0_4, %c0_5, %c0_6, %c0_7] : memref<4x2x8x8x4xf32, #tpu.memory_space<vmem>>, vector<1x2x8x8x4xf32>
    %3 = vector.shape_cast %2 : vector<1x2x8x8x4xf32> to vector<2x8x8x4xf32>
    %4 = arith.maximumf %1, %3 : vector<2x8x8x4xf32>
    %c2 = arith.constant 2 : index
    %c0_8 = arith.constant 0 : index
    %c0_9 = arith.constant 0 : index
    %c0_10 = arith.constant 0 : index
    %c0_11 = arith.constant 0 : index
    %5 = vector.load %arg0[%c2, %c0_8, %c0_9, %c0_10, %c0_11] : memref<4x2x8x8x4xf32, #tpu.memory_space<vmem>>, vector<1x2x8x8x4xf32>
    %6 = vector.shape_cast %5 : vector<1x2x8x8x4xf32> to vector<2x8x8x4xf32>
    %c3 = arith.constant 3 : index
    %c0_12 = arith.constant 0 : index
    %c0_13 = arith.constant 0 : index
    %c0_14 = arith.constant 0 : index
    %c0_15 = arith.constant 0 : index
    %7 = vector.load %arg0[%c3, %c0_12, %c0_13, %c0_14, %c0_15] : memref<4x2x8x8x4xf32, #tpu.memory_space<vmem>>, vector<1x2x8x8x4xf32>
    %8 = vector.shape_cast %7 : vector<1x2x8x8x4xf32> to vector<2x8x8x4xf32>
    %9 = arith.maximumf %6, %8 : vector<2x8x8x4xf32>
    %10 = arith.maximumf %4, %9 : vector<2x8x8x4xf32>
    %cst = arith.constant 0.000000e+00 : f32
    %11 = vector.broadcast %cst : f32 to vector<2x1x10x8xf32>
    %c0_16 = arith.constant 0 : index
    %c0_17 = arith.constant 0 : index
    %c0_18 = arith.constant 0 : index
    %c0_19 = arith.constant 0 : index
    %12 = vector.load %arg14[%c0_16, %c0_17, %c0_18, %c0_19] : memref<2x10x16x8xf32, #tpu.memory_space<vmem>>, vector<2x1x10x8xf32>
    tpu.vector_store %arg14[%c0_16, %c0_17, %c0_18, %c0_19], %11 {strides = array<i32>} : memref<2x10x16x8xf32, #tpu.memory_space<vmem>>, vector<2x1x10x8xf32>,
    %cst_20 = arith.constant 0.000000e+00 : f32
    %13 = vector.broadcast %cst_20 : f32 to vector<2x1x10x8xf32>
    %c0_21 = arith.constant 0 : index
    %c9 = arith.constant 9 : index
    %c0_22 = arith.constant 0 : index
    %c0_23 = arith.constant 0 : index
    %14 = vector.load %arg14[%c0_21, %c9, %c0_22, %c0_23] : memref<2x10x16x8xf32, #tpu.memory_space<vmem>>, vector<2x1x10x8xf32>
    tpu.vector_store %arg14[%c0_21, %c9, %c0_22, %c0_23], %13 {strides = array<i32>} : memref<2x10x16x8xf32, #tpu.memory_space<vmem>>, vector<2x1x10x8xf32>,
    %cst_24 = arith.constant 0.000000e+00 : f32
    %15 = vector.broadcast %cst_24 : f32 to vector<2x8x1x8xf32>
    %c0_25 = arith.constant 0 : index
    %c1_26 = arith.constant 1 : index
    %c0_27 = arith.constant 0 : index
    %c0_28 = arith.constant 0 : index
    %16 = vector.load %arg14[%c0_25, %c1_26, %c0_27, %c0_28] : memref<2x10x16x8xf32, #tpu.memory_space<vmem>>, vector<2x8x1x8xf32>
    tpu.vector_store %arg14[%c0_25, %c1_26, %c0_27, %c0_28], %15 {strides = array<i32>} : memref<2x10x16x8xf32, #tpu.memory_space<vmem>>, vector<2x8x1x8xf32>,
    %cst_29 = arith.constant 0.000000e+00 : f32
    %17 = vector.broadcast %cst_29 : f32 to vector<2x8x1x8xf32>
    %c0_30 = arith.constant 0 : index
    %c1_31 = arith.constant 1 : index
    %c9_32 = arith.constant 9 : index
    %c0_33 = arith.constant 0 : index
    %18 = vector.load %arg14[%c0_30, %c1_31, %c9_32, %c0_33] : memref<2x10x16x8xf32, #tpu.memory_space<vmem>>, vector<2x8x1x8xf32>
    tpu.vector_store %arg14[%c0_30, %c1_31, %c9_32, %c0_33], %17 {strides = array<i32>} : memref<2x10x16x8xf32, #tpu.memory_space<vmem>>, vector<2x8x1x8xf32>,
    %c0_34 = arith.constant 0 : index
    %c0_35 = arith.constant 0 : index
    %19 = vector.load %arg1[%c0_34, %c0_35] : memref<9x4xf32, #tpu.memory_space<vmem>>, vector<9x4xf32>
    %c0_36 = arith.constant 0 : index
    %c0_37 = arith.constant 0 : index
    %20 = vector.load %arg2[%c0_36, %c0_37] : memref<1x4xf32, #tpu.memory_space<vmem>>, vector<1x4xf32>
    %c0_38 = arith.constant 0 : index
    %c0_39 = arith.constant 0 : index
    %21 = vector.load %arg3[%c0_38, %c0_39] : memref<4x8xf32, #tpu.memory_space<vmem>>, vector<4x8xf32>
    %c0_40 = arith.constant 0 : index
    %c0_41 = arith.constant 0 : index
    %22 = vector.load %arg4[%c0_40, %c0_41] : memref<1x8xf32, #tpu.memory_space<vmem>>, vector<1x8xf32>
    %c0_42 = arith.constant 0 : index
    %c0_43 = arith.constant 0 : index
    %23 = vector.load %arg5[%c0_42, %c0_43] : memref<1x8xf32, #tpu.memory_space<vmem>>, vector<1x8xf32>
    %c0_44 = arith.constant 0 : index
    %c0_45 = arith.constant 0 : index
    %24 = vector.load %arg6[%c0_44, %c0_45] : memref<1x8xf32, #tpu.memory_space<vmem>>, vector<1x8xf32>
    %c0_46 = arith.constant 0 : index
    %c1_47 = arith.constant 1 : index
    %c1_48 = arith.constant 1 : index
    %c0_49 = arith.constant 0 : index
    %25 = vector.load %arg14[%c0_46, %c1_47, %c1_48, %c0_49] : memref<2x10x16x8xf32, #tpu.memory_space<vmem>>, vector<2x8x8x4xf32>
    tpu.vector_store %arg14[%c0_46, %c1_47, %c1_48, %c0_49], %10 {strides = array<i32>} : memref<2x10x16x8xf32, #tpu.memory_space<vmem>>, vector<2x8x8x4xf32>,
    %26 = vector.extract_strided_slice %19 {offsets = [4, 0], sizes = [1, 4], strides = [1, 1]} : vector<9x4xf32> to vector<1x4xf32>
    %27 = vector.shape_cast %26 : vector<1x4xf32> to vector<4xf32>
    %28 = vector.shape_cast %27 : vector<4xf32> to vector<1x1x1x4xf32>
    %29 = vector.broadcast %28 : vector<1x1x1x4xf32> to vector<2x8x8x4xf32>
    %30 = arith.mulf %10, %29 : vector<2x8x8x4xf32>
    %31 = vector.extract_strided_slice %19 {offsets = [0, 0], sizes = [1, 4], strides = [1, 1]} : vector<9x4xf32> to vector<1x4xf32>
    %32 = vector.shape_cast %31 : vector<1x4xf32> to vector<4xf32>
    %33 = vector.shape_cast %32 : vector<4xf32> to vector<1x1x1x4xf32>
    %c0_50 = arith.constant 0 : index
    %c0_51 = arith.constant 0 : index
    %c0_52 = arith.constant 0 : index
    %c0_53 = arith.constant 0 : index
    %34 = vector.load %arg14[%c0_50, %c0_51, %c0_52, %c0_53] : memref<2x10x16x8xf32, #tpu.memory_space<vmem>>, vector<2x8x8x4xf32>
    %35 = vector.broadcast %33 : vector<1x1x1x4xf32> to vector<2x8x8x4xf32>
    %36 = arith.mulf %34, %35 : vector<2x8x8x4xf32>
    %37 = arith.addf %30, %36 : vector<2x8x8x4xf32>
    %38 = vector.extract_strided_slice %19 {offsets = [1, 0], sizes = [1, 4], strides = [1, 1]} : vector<9x4xf32> to vector<1x4xf32>
    %39 = vector.shape_cast %38 : vector<1x4xf32> to vector<4xf32>
    %40 = vector.shape_cast %39 : vector<4xf32> to vector<1x1x1x4xf32>
    %c0_54 = arith.constant 0 : index
    %c0_55 = arith.constant 0 : index
    %c1_56 = arith.constant 1 : index
    %c0_57 = arith.constant 0 : index
    %41 = vector.load %arg14[%c0_54, %c0_55, %c1_56, %c0_57] : memref<2x10x16x8xf32, #tpu.memory_space<vmem>>, vector<2x8x8x4xf32>
    %42 = vector.broadcast %40 : vector<1x1x1x4xf32> to vector<2x8x8x4xf32>
    %43 = arith.mulf %41, %42 : vector<2x8x8x4xf32>
    %44 = arith.addf %37, %43 : vector<2x8x8x4xf32>
    %45 = vector.extract_strided_slice %19 {offsets = [2, 0], sizes = [1, 4], strides = [1, 1]} : vector<9x4xf32> to vector<1x4xf32>
    %46 = vector.shape_cast %45 : vector<1x4xf32> to vector<4xf32>
    %47 = vector.shape_cast %46 : vector<4xf32> to vector<1x1x1x4xf32>
    %c0_58 = arith.constant 0 : index
    %c0_59 = arith.constant 0 : index
    %c2_60 = arith.constant 2 : index
    %c0_61 = arith.constant 0 : index
    %48 = vector.load %arg14[%c0_58, %c0_59, %c2_60, %c0_61] : memref<2x10x16x8xf32, #tpu.memory_space<vmem>>, vector<2x8x8x4xf32>
    %49 = vector.broadcast %47 : vector<1x1x1x4xf32> to vector<2x8x8x4xf32>
    %50 = arith.mulf %48, %49 : vector<2x8x8x4xf32>
    %51 = arith.addf %44, %50 : vector<2x8x8x4xf32>
    %52 = vector.extract_strided_slice %19 {offsets = [3, 0], sizes = [1, 4], strides = [1, 1]} : vector<9x4xf32> to vector<1x4xf32>
    %53 = vector.shape_cast %52 : vector<1x4xf32> to vector<4xf32>
    %54 = vector.shape_cast %53 : vector<4xf32> to vector<1x1x1x4xf32>
    %c0_62 = arith.constant 0 : index
    %c1_63 = arith.constant 1 : index
    %c0_64 = arith.constant 0 : index
    %c0_65 = arith.constant 0 : index
    %55 = vector.load %arg14[%c0_62, %c1_63, %c0_64, %c0_65] : memref<2x10x16x8xf32, #tpu.memory_space<vmem>>, vector<2x8x8x4xf32>
    %56 = vector.broadcast %54 : vector<1x1x1x4xf32> to vector<2x8x8x4xf32>
    %57 = arith.mulf %55, %56 : vector<2x8x8x4xf32>
    %58 = arith.addf %51, %57 : vector<2x8x8x4xf32>
    %59 = vector.extract_strided_slice %19 {offsets = [5, 0], sizes = [1, 4], strides = [1, 1]} : vector<9x4xf32> to vector<1x4xf32>
    %60 = vector.shape_cast %59 : vector<1x4xf32> to vector<4xf32>
    %61 = vector.shape_cast %60 : vector<4xf32> to vector<1x1x1x4xf32>
    %c0_66 = arith.constant 0 : index
    %c1_67 = arith.constant 1 : index
    %c2_68 = arith.constant 2 : index
    %c0_69 = arith.constant 0 : index
    %62 = vector.load %arg14[%c0_66, %c1_67, %c2_68, %c0_69] : memref<2x10x16x8xf32, #tpu.memory_space<vmem>>, vector<2x8x8x4xf32>
    %63 = vector.broadcast %61 : vector<1x1x1x4xf32> to vector<2x8x8x4xf32>
    %64 = arith.mulf %62, %63 : vector<2x8x8x4xf32>
    %65 = arith.addf %58, %64 : vector<2x8x8x4xf32>
    %66 = vector.extract_strided_slice %19 {offsets = [6, 0], sizes = [1, 4], strides = [1, 1]} : vector<9x4xf32> to vector<1x4xf32>
    %67 = vector.shape_cast %66 : vector<1x4xf32> to vector<4xf32>
    %68 = vector.shape_cast %67 : vector<4xf32> to vector<1x1x1x4xf32>
    %c0_70 = arith.constant 0 : index
    %c2_71 = arith.constant 2 : index
    %c0_72 = arith.constant 0 : index
    %c0_73 = arith.constant 0 : index
    %69 = vector.load %arg14[%c0_70, %c2_71, %c0_72, %c0_73] : memref<2x10x16x8xf32, #tpu.memory_space<vmem>>, vector<2x8x8x4xf32>
    %70 = vector.broadcast %68 : vector<1x1x1x4xf32> to vector<2x8x8x4xf32>
    %71 = arith.mulf %69, %70 : vector<2x8x8x4xf32>
    %72 = arith.addf %65, %71 : vector<2x8x8x4xf32>
    %73 = vector.extract_strided_slice %19 {offsets = [7, 0], sizes = [1, 4], strides = [1, 1]} : vector<9x4xf32> to vector<1x4xf32>
    %74 = vector.shape_cast %73 : vector<1x4xf32> to vector<4xf32>
    %75 = vector.shape_cast %74 : vector<4xf32> to vector<1x1x1x4xf32>
    %c0_74 = arith.constant 0 : index
    %c2_75 = arith.constant 2 : index
    %c1_76 = arith.constant 1 : index
    %c0_77 = arith.constant 0 : index
    %76 = vector.load %arg14[%c0_74, %c2_75, %c1_76, %c0_77] : memref<2x10x16x8xf32, #tpu.memory_space<vmem>>, vector<2x8x8x4xf32>
    %77 = vector.broadcast %75 : vector<1x1x1x4xf32> to vector<2x8x8x4xf32>
    %78 = arith.mulf %76, %77 : vector<2x8x8x4xf32>
    %79 = arith.addf %72, %78 : vector<2x8x8x4xf32>
    %80 = vector.extract_strided_slice %19 {offsets = [8, 0], sizes = [1, 4], strides = [1, 1]} : vector<9x4xf32> to vector<1x4xf32>
    %81 = vector.shape_cast %80 : vector<1x4xf32> to vector<4xf32>
    %82 = vector.shape_cast %81 : vector<4xf32> to vector<1x1x1x4xf32>
    %c0_78 = arith.constant 0 : index
    %c2_79 = arith.constant 2 : index
    %c2_80 = arith.constant 2 : index
    %c0_81 = arith.constant 0 : index
    %83 = vector.load %arg14[%c0_78, %c2_79, %c2_80, %c0_81] : memref<2x10x16x8xf32, #tpu.memory_space<vmem>>, vector<2x8x8x4xf32>
    %84 = vector.broadcast %82 : vector<1x1x1x4xf32> to vector<2x8x8x4xf32>
    %85 = arith.mulf %83, %84 : vector<2x8x8x4xf32>
    %86 = arith.addf %79, %85 : vector<2x8x8x4xf32>
    %87 = vector.shape_cast %20 : vector<1x4xf32> to vector<1x1x1x4xf32>
    %88 = vector.broadcast %87 : vector<1x1x1x4xf32> to vector<2x8x8x4xf32>
    %89 = arith.addf %86, %88 : vector<2x8x8x4xf32>
    %90 = vector.shape_cast %89 : vector<2x8x8x4xf32> to vector<128x4xf32>
    %cst_82 = arith.constant dense<0.000000e+00> : vector<128x8xf32>
    %91 = tpu.matmul %90, %21, %cst_82 {dimension_numbers = #tpu.dot_dimension_numbers<[1], [0], [0], [1], [0, 0, 1, 1], [], []>} : vector<128x4xf32>, vector<4x8xf32>, vector<128x8xf32> -> vector<128x8xf32>
    %92 = vector.broadcast %22 : vector<1x8xf32> to vector<128x8xf32>
    %93 = arith.addf %91, %92 : vector<128x8xf32>
    %cst_83 = arith.constant 1.000000e+00 : f32
    %94 = vector.broadcast %cst_83 : f32 to vector<1x128xf32>
    %cst_84 = arith.constant dense<0.000000e+00> : vector<1x8xf32>
    %95 = tpu.matmul %94, %93, %cst_84 {dimension_numbers = #tpu.dot_dimension_numbers<[1], [0], [0], [1], [0, 0, 1, 1], [], []>} : vector<1x128xf32>, vector<128x8xf32>, vector<1x8xf32> -> vector<1x8xf32>
    %96 = arith.mulf %93, %93 : vector<128x8xf32>
    %cst_85 = arith.constant dense<0.000000e+00> : vector<1x8xf32>
    %97 = tpu.matmul %94, %96, %cst_85 {dimension_numbers = #tpu.dot_dimension_numbers<[1], [0], [0], [1], [0, 0, 1, 1], [], []>} : vector<1x128xf32>, vector<128x8xf32>, vector<1x8xf32> -> vector<1x8xf32>
    %cst_86 = arith.constant 7.812500e-03 : f32
    %98 = vector.broadcast %cst_86 : f32 to vector<1x8xf32>
    %99 = arith.mulf %95, %98 : vector<1x8xf32>
    %cst_87 = arith.constant 7.812500e-03 : f32
    %100 = vector.broadcast %cst_87 : f32 to vector<1x8xf32>
    %101 = arith.mulf %97, %100 : vector<1x8xf32>
    %102 = arith.mulf %99, %99 : vector<1x8xf32>
    %103 = arith.subf %101, %102 : vector<1x8xf32>
    %cst_88 = arith.constant 9.99999974E-6 : f32
    %104 = vector.broadcast %cst_88 : f32 to vector<1x8xf32>
    %105 = arith.addf %103, %104 : vector<1x8xf32>
    %106 = math.rsqrt %105 : vector<1x8xf32>
    %107 = arith.mulf %23, %106 : vector<1x8xf32>
    %108 = arith.mulf %99, %107 : vector<1x8xf32>
    %109 = arith.subf %24, %108 : vector<1x8xf32>
    %110 = vector.broadcast %107 : vector<1x8xf32> to vector<128x8xf32>
    %111 = arith.mulf %93, %110 : vector<128x8xf32>
    %112 = vector.broadcast %109 : vector<1x8xf32> to vector<128x8xf32>
    %113 = arith.addf %111, %112 : vector<128x8xf32>
    %cst_89 = arith.constant 0.000000e+00 : f32
    %114 = vector.broadcast %cst_89 : f32 to vector<128x8xf32>
    %115 = arith.maximumf %113, %114 : vector<128x8xf32>
    %116 = vector.shape_cast %115 : vector<128x8xf32> to vector<2x8x8x8xf32>
    %c0_90 = arith.constant 0 : index
    %c0_91 = arith.constant 0 : index
    %117 = vector.load %arg7[%c0_90, %c0_91] : memref<9x8xf32, #tpu.memory_space<vmem>>, vector<9x8xf32>
    %c0_92 = arith.constant 0 : index
    %c0_93 = arith.constant 0 : index
    %118 = vector.load %arg8[%c0_92, %c0_93] : memref<1x8xf32, #tpu.memory_space<vmem>>, vector<1x8xf32>
    %c0_94 = arith.constant 0 : index
    %c0_95 = arith.constant 0 : index
    %119 = vector.load %arg9[%c0_94, %c0_95] : memref<8x8xf32, #tpu.memory_space<vmem>>, vector<8x8xf32>
    %c0_96 = arith.constant 0 : index
    %c0_97 = arith.constant 0 : index
    %120 = vector.load %arg10[%c0_96, %c0_97] : memref<1x8xf32, #tpu.memory_space<vmem>>, vector<1x8xf32>
    %c0_98 = arith.constant 0 : index
    %c0_99 = arith.constant 0 : index
    %121 = vector.load %arg11[%c0_98, %c0_99] : memref<1x8xf32, #tpu.memory_space<vmem>>, vector<1x8xf32>
    %c0_100 = arith.constant 0 : index
    %c0_101 = arith.constant 0 : index
    %122 = vector.load %arg12[%c0_100, %c0_101] : memref<1x8xf32, #tpu.memory_space<vmem>>, vector<1x8xf32>
    %c0_102 = arith.constant 0 : index
    %c1_103 = arith.constant 1 : index
    %c1_104 = arith.constant 1 : index
    %c0_105 = arith.constant 0 : index
    %123 = vector.load %arg14[%c0_102, %c1_103, %c1_104, %c0_105] : memref<2x10x16x8xf32, #tpu.memory_space<vmem>>, vector<2x8x8x8xf32>
    tpu.vector_store %arg14[%c0_102, %c1_103, %c1_104, %c0_105], %116 {strides = array<i32>} : memref<2x10x16x8xf32, #tpu.memory_space<vmem>>, vector<2x8x8x8xf32>,
    %124 = vector.extract_strided_slice %117 {offsets = [4, 0], sizes = [1, 8], strides = [1, 1]} : vector<9x8xf32> to vector<1x8xf32>
    %125 = vector.shape_cast %124 : vector<1x8xf32> to vector<8xf32>
    %126 = vector.shape_cast %125 : vector<8xf32> to vector<1x1x1x8xf32>
    %127 = vector.broadcast %126 : vector<1x1x1x8xf32> to vector<2x8x8x8xf32>
    %128 = arith.mulf %116, %127 : vector<2x8x8x8xf32>
    %129 = vector.extract_strided_slice %117 {offsets = [0, 0], sizes = [1, 8], strides = [1, 1]} : vector<9x8xf32> to vector<1x8xf32>
    %130 = vector.shape_cast %129 : vector<1x8xf32> to vector<8xf32>
    %131 = vector.shape_cast %130 : vector<8xf32> to vector<1x1x1x8xf32>
    %c0_106 = arith.constant 0 : index
    %c0_107 = arith.constant 0 : index
    %c0_108 = arith.constant 0 : index
    %c0_109 = arith.constant 0 : index
    %132 = vector.load %arg14[%c0_106, %c0_107, %c0_108, %c0_109] : memref<2x10x16x8xf32, #tpu.memory_space<vmem>>, vector<2x8x8x8xf32>
    %133 = vector.broadcast %131 : vector<1x1x1x8xf32> to vector<2x8x8x8xf32>
    %134 = arith.mulf %132, %133 : vector<2x8x8x8xf32>
    %135 = arith.addf %128, %134 : vector<2x8x8x8xf32>
    %136 = vector.extract_strided_slice %117 {offsets = [1, 0], sizes = [1, 8], strides = [1, 1]} : vector<9x8xf32> to vector<1x8xf32>
    %137 = vector.shape_cast %136 : vector<1x8xf32> to vector<8xf32>
    %138 = vector.shape_cast %137 : vector<8xf32> to vector<1x1x1x8xf32>
    %c0_110 = arith.constant 0 : index
    %c0_111 = arith.constant 0 : index
    %c1_112 = arith.constant 1 : index
    %c0_113 = arith.constant 0 : index
    %139 = vector.load %arg14[%c0_110, %c0_111, %c1_112, %c0_113] : memref<2x10x16x8xf32, #tpu.memory_space<vmem>>, vector<2x8x8x8xf32>
    %140 = vector.broadcast %138 : vector<1x1x1x8xf32> to vector<2x8x8x8xf32>
    %141 = arith.mulf %139, %140 : vector<2x8x8x8xf32>
    %142 = arith.addf %135, %141 : vector<2x8x8x8xf32>
    %143 = vector.extract_strided_slice %117 {offsets = [2, 0], sizes = [1, 8], strides = [1, 1]} : vector<9x8xf32> to vector<1x8xf32>
    %144 = vector.shape_cast %143 : vector<1x8xf32> to vector<8xf32>
    %145 = vector.shape_cast %144 : vector<8xf32> to vector<1x1x1x8xf32>
    %c0_114 = arith.constant 0 : index
    %c0_115 = arith.constant 0 : index
    %c2_116 = arith.constant 2 : index
    %c0_117 = arith.constant 0 : index
    %146 = vector.load %arg14[%c0_114, %c0_115, %c2_116, %c0_117] : memref<2x10x16x8xf32, #tpu.memory_space<vmem>>, vector<2x8x8x8xf32>
    %147 = vector.broadcast %145 : vector<1x1x1x8xf32> to vector<2x8x8x8xf32>
    %148 = arith.mulf %146, %147 : vector<2x8x8x8xf32>
    %149 = arith.addf %142, %148 : vector<2x8x8x8xf32>
    %150 = vector.extract_strided_slice %117 {offsets = [3, 0], sizes = [1, 8], strides = [1, 1]} : vector<9x8xf32> to vector<1x8xf32>
    %151 = vector.shape_cast %150 : vector<1x8xf32> to vector<8xf32>
    %152 = vector.shape_cast %151 : vector<8xf32> to vector<1x1x1x8xf32>
    %c0_118 = arith.constant 0 : index
    %c1_119 = arith.constant 1 : index
    %c0_120 = arith.constant 0 : index
    %c0_121 = arith.constant 0 : index
    %153 = vector.load %arg14[%c0_118, %c1_119, %c0_120, %c0_121] : memref<2x10x16x8xf32, #tpu.memory_space<vmem>>, vector<2x8x8x8xf32>
    %154 = vector.broadcast %152 : vector<1x1x1x8xf32> to vector<2x8x8x8xf32>
    %155 = arith.mulf %153, %154 : vector<2x8x8x8xf32>
    %156 = arith.addf %149, %155 : vector<2x8x8x8xf32>
    %157 = vector.extract_strided_slice %117 {offsets = [5, 0], sizes = [1, 8], strides = [1, 1]} : vector<9x8xf32> to vector<1x8xf32>
    %158 = vector.shape_cast %157 : vector<1x8xf32> to vector<8xf32>
    %159 = vector.shape_cast %158 : vector<8xf32> to vector<1x1x1x8xf32>
    %c0_122 = arith.constant 0 : index
    %c1_123 = arith.constant 1 : index
    %c2_124 = arith.constant 2 : index
    %c0_125 = arith.constant 0 : index
    %160 = vector.load %arg14[%c0_122, %c1_123, %c2_124, %c0_125] : memref<2x10x16x8xf32, #tpu.memory_space<vmem>>, vector<2x8x8x8xf32>
    %161 = vector.broadcast %159 : vector<1x1x1x8xf32> to vector<2x8x8x8xf32>
    %162 = arith.mulf %160, %161 : vector<2x8x8x8xf32>
    %163 = arith.addf %156, %162 : vector<2x8x8x8xf32>
    %164 = vector.extract_strided_slice %117 {offsets = [6, 0], sizes = [1, 8], strides = [1, 1]} : vector<9x8xf32> to vector<1x8xf32>
    %165 = vector.shape_cast %164 : vector<1x8xf32> to vector<8xf32>
    %166 = vector.shape_cast %165 : vector<8xf32> to vector<1x1x1x8xf32>
    %c0_126 = arith.constant 0 : index
    %c2_127 = arith.constant 2 : index
    %c0_128 = arith.constant 0 : index
    %c0_129 = arith.constant 0 : index
    %167 = vector.load %arg14[%c0_126, %c2_127, %c0_128, %c0_129] : memref<2x10x16x8xf32, #tpu.memory_space<vmem>>, vector<2x8x8x8xf32>
    %168 = vector.broadcast %166 : vector<1x1x1x8xf32> to vector<2x8x8x8xf32>
    %169 = arith.mulf %167, %168 : vector<2x8x8x8xf32>
    %170 = arith.addf %163, %169 : vector<2x8x8x8xf32>
    %171 = vector.extract_strided_slice %117 {offsets = [7, 0], sizes = [1, 8], strides = [1, 1]} : vector<9x8xf32> to vector<1x8xf32>
    %172 = vector.shape_cast %171 : vector<1x8xf32> to vector<8xf32>
    %173 = vector.shape_cast %172 : vector<8xf32> to vector<1x1x1x8xf32>
    %c0_130 = arith.constant 0 : index
    %c2_131 = arith.constant 2 : index
    %c1_132 = arith.constant 1 : index
    %c0_133 = arith.constant 0 : index
    %174 = vector.load %arg14[%c0_130, %c2_131, %c1_132, %c0_133] : memref<2x10x16x8xf32, #tpu.memory_space<vmem>>, vector<2x8x8x8xf32>
    %175 = vector.broadcast %173 : vector<1x1x1x8xf32> to vector<2x8x8x8xf32>
    %176 = arith.mulf %174, %175 : vector<2x8x8x8xf32>
    %177 = arith.addf %170, %176 : vector<2x8x8x8xf32>
    %178 = vector.extract_strided_slice %117 {offsets = [8, 0], sizes = [1, 8], strides = [1, 1]} : vector<9x8xf32> to vector<1x8xf32>
    %179 = vector.shape_cast %178 : vector<1x8xf32> to vector<8xf32>
    %180 = vector.shape_cast %179 : vector<8xf32> to vector<1x1x1x8xf32>
    %c0_134 = arith.constant 0 : index
    %c2_135 = arith.constant 2 : index
    %c2_136 = arith.constant 2 : index
    %c0_137 = arith.constant 0 : index
    %181 = vector.load %arg14[%c0_134, %c2_135, %c2_136, %c0_137] : memref<2x10x16x8xf32, #tpu.memory_space<vmem>>, vector<2x8x8x8xf32>
    %182 = vector.broadcast %180 : vector<1x1x1x8xf32> to vector<2x8x8x8xf32>
    %183 = arith.mulf %181, %182 : vector<2x8x8x8xf32>
    %184 = arith.addf %177, %183 : vector<2x8x8x8xf32>
    %185 = vector.shape_cast %118 : vector<1x8xf32> to vector<1x1x1x8xf32>
    %186 = vector.broadcast %185 : vector<1x1x1x8xf32> to vector<2x8x8x8xf32>
    %187 = arith.addf %184, %186 : vector<2x8x8x8xf32>
    %188 = vector.shape_cast %187 : vector<2x8x8x8xf32> to vector<128x8xf32>
    %cst_138 = arith.constant dense<0.000000e+00> : vector<128x8xf32>
    %189 = tpu.matmul %188, %119, %cst_138 {dimension_numbers = #tpu.dot_dimension_numbers<[1], [0], [0], [1], [0, 0, 1, 1], [], []>} : vector<128x8xf32>, vector<8x8xf32>, vector<128x8xf32> -> vector<128x8xf32>
    %190 = vector.broadcast %120 : vector<1x8xf32> to vector<128x8xf32>
    %191 = arith.addf %189, %190 : vector<128x8xf32>
    %cst_139 = arith.constant 1.000000e+00 : f32
    %192 = vector.broadcast %cst_139 : f32 to vector<1x128xf32>
    %cst_140 = arith.constant dense<0.000000e+00> : vector<1x8xf32>
    %193 = tpu.matmul %192, %191, %cst_140 {dimension_numbers = #tpu.dot_dimension_numbers<[1], [0], [0], [1], [0, 0, 1, 1], [], []>} : vector<1x128xf32>, vector<128x8xf32>, vector<1x8xf32> -> vector<1x8xf32>
    %194 = arith.mulf %191, %191 : vector<128x8xf32>
    %cst_141 = arith.constant dense<0.000000e+00> : vector<1x8xf32>
    %195 = tpu.matmul %192, %194, %cst_141 {dimension_numbers = #tpu.dot_dimension_numbers<[1], [0], [0], [1], [0, 0, 1, 1], [], []>} : vector<1x128xf32>, vector<128x8xf32>, vector<1x8xf32> -> vector<1x8xf32>
    %cst_142 = arith.constant 7.812500e-03 : f32
    %196 = vector.broadcast %cst_142 : f32 to vector<1x8xf32>
    %197 = arith.mulf %193, %196 : vector<1x8xf32>
    %cst_143 = arith.constant 7.812500e-03 : f32
    %198 = vector.broadcast %cst_143 : f32 to vector<1x8xf32>
    %199 = arith.mulf %195, %198 : vector<1x8xf32>
    %200 = arith.mulf %197, %197 : vector<1x8xf32>
    %201 = arith.subf %199, %200 : vector<1x8xf32>
    %cst_144 = arith.constant 9.99999974E-6 : f32
    %202 = vector.broadcast %cst_144 : f32 to vector<1x8xf32>
    %203 = arith.addf %201, %202 : vector<1x8xf32>
    %204 = math.rsqrt %203 : vector<1x8xf32>
    %205 = arith.mulf %121, %204 : vector<1x8xf32>
    %206 = arith.mulf %197, %205 : vector<1x8xf32>
    %207 = arith.subf %122, %206 : vector<1x8xf32>
    %208 = vector.broadcast %205 : vector<1x8xf32> to vector<128x8xf32>
    %209 = arith.mulf %191, %208 : vector<128x8xf32>
    %210 = vector.broadcast %207 : vector<1x8xf32> to vector<128x8xf32>
    %211 = arith.addf %209, %210 : vector<128x8xf32>
    %cst_145 = arith.constant 0.000000e+00 : f32
    %212 = vector.broadcast %cst_145 : f32 to vector<128x8xf32>
    %213 = arith.maximumf %211, %212 : vector<128x8xf32>
    %214 = vector.shape_cast %213 : vector<128x8xf32> to vector<2x8x8x8xf32>
    %c0_146 = arith.constant 0 : index
    %c0_147 = arith.constant 0 : index
    %c0_148 = arith.constant 0 : index
    %c0_149 = arith.constant 0 : index
    %215 = vector.load %arg13[%c0_146, %c0_147, %c0_148, %c0_149] : memref<2x8x8x8xf32, #tpu.memory_space<vmem>>, vector<2x8x8x8xf32>
    tpu.vector_store %arg13[%c0_146, %c0_147, %c0_148, %c0_149], %214 {strides = array<i32>} : memref<2x8x8x8xf32, #tpu.memory_space<vmem>>, vector<2x8x8x8xf32>,
    return
  }
}

</mosaic_0001>

<llo_original>
// kernel: tpu_custom_call.1
$region0: #{tpu_custom_call.1}
  #allocation0 [shape = 'u32[]', space=smem, size = 0x4, offset = 0x4, fixed_abs, tag = 'smem constant byte address 0x4 - core index']
  #allocation1 [shape = 'u32[72,128]{1,0:T(1,128)}', space=vmem, size = 0x9000, scoped, tag = 'internal scratch']
  #allocation2 [shape = 'f32[2,10,16,8]{3,2,1,0:T(8,128)}', space=vmem, size = 0x28000, scoped, tag = 'scratch operand']
  %s0 = inlined_call_operand.vmem [shape: f32[4,2,8,8,4], index: 0, kind: input, shape index: {}]
  %s1 = inlined_call_operand.vmem [shape: f32[9,4], index: 1, kind: input, shape index: {}]
  %s2 = inlined_call_operand.vmem [shape: f32[1,4], index: 2, kind: input, shape index: {}]
  %s3 = inlined_call_operand.vmem [shape: f32[4,8], index: 3, kind: input, shape index: {}]
  %s4 = inlined_call_operand.vmem [shape: f32[1,8], index: 4, kind: input, shape index: {}]
  %s5 = inlined_call_operand.vmem [shape: f32[1,8], index: 5, kind: input, shape index: {}]
  %s6 = inlined_call_operand.vmem [shape: f32[1,8], index: 6, kind: input, shape index: {}]
  %s7 = inlined_call_operand.vmem [shape: f32[9,8], index: 7, kind: input, shape index: {}]
  %s8 = inlined_call_operand.vmem [shape: f32[1,8], index: 8, kind: input, shape index: {}]
  %s9 = inlined_call_operand.vmem [shape: f32[8,8], index: 9, kind: input, shape index: {}]
  %s10 = inlined_call_operand.vmem [shape: f32[1,8], index: 10, kind: input, shape index: {}]
  %s11 = inlined_call_operand.vmem [shape: f32[1,8], index: 11, kind: input, shape index: {}]
  %s12 = inlined_call_operand.vmem [shape: f32[1,8], index: 12, kind: input, shape index: {}]
  %s13 = inlined_call_operand.hbm [shape: f32[2,8,8,8], index: 13, kind: output, shape index: {}]
  %s14 = sld [smem:[#allocation0]]
  $region62: #{tpu_custom_call.1} parent=0
    _
  %s16 = ssub.s32 1, %s14
  %s17 = scalar_select 0, %s16, %s14
  $region1: #{tpu_custom_call.1} parent=0
    #allocation3 [shape = 'u8[65536]{0}', space=vmem, size = 0x10000, scoped, tag = 'output window, operand 0, single buffered']
    #allocation4 [shape = 's32[1]{0}', space=sflag, size = 0x4, scoped, tag = 'scoped memory for tpu_custom_call.1']
    %18 = vsyncpa [#allocation4], 0
    // Predicated region
    $region2: #{tpu_custom_call.1} parent=1 // pred_check
      _
    $region3: #{tpu_custom_call.1} parent=1 // pred_check_branch
      %20 = sbr.rel (0) target = $region5
    $region4: #{tpu_custom_call.1} parent=1 // pred_region
      _
    $region5: #{tpu_custom_call.1} parent=1 // pred_fallthru
      _
    // Predicated region
    $region6: #{tpu_custom_call.1} parent=1 // pred_check
      _
    $region7: #{tpu_custom_call.1} parent=1 // pred_check_branch
      %22 = sbr.rel (0) target = $region9
    $region8: #{tpu_custom_call.1} parent=1 // pred_region
      _
    $region9: #{tpu_custom_call.1} parent=1 // pred_fallthru
      _
    // Predicated region
    $region10: #{tpu_custom_call.1} parent=1 // pred_check
      _
    $region11: #{tpu_custom_call.1} parent=1 // pred_check_branch
      %24 = sbr.rel (0) target = $region13
    $region12: #{tpu_custom_call.1} parent=1 // pred_region
      _
    $region13: #{tpu_custom_call.1} parent=1 // pred_fallthru
      _
    // Predicated region
    $region14: #{tpu_custom_call.1} parent=1 // pred_check
      _
    $region15: #{tpu_custom_call.1} parent=1 // pred_check_branch
      %26 = sbr.rel (0) target = $region17
    $region16: #{tpu_custom_call.1} parent=1 // pred_region
      _
    $region17: #{tpu_custom_call.1} parent=1 // pred_fallthru
      _
    // Predicated region
    $region18: #{tpu_custom_call.1} parent=1 // pred_check
      _
    $region19: #{tpu_custom_call.1} parent=1 // pred_check_branch
      %28 = sbr.rel (0) target = $region21
    $region20: #{tpu_custom_call.1} parent=1 // pred_region
      _
    $region21: #{tpu_custom_call.1} parent=1 // pred_fallthru
      _
    // Predicated region
    $region22: #{tpu_custom_call.1} parent=1 // pred_check
      _
    $region23: #{tpu_custom_call.1} parent=1 // pred_check_branch
      %30 = sbr.rel (0) target = $region25
    $region24: #{tpu_custom_call.1} parent=1 // pred_region
      _
    $region25: #{tpu_custom_call.1} parent=1 // pred_fallthru
      _
    // Predicated region
    $region26: #{tpu_custom_call.1} parent=1 // pred_check
      _
    $region27: #{tpu_custom_call.1} parent=1 // pred_check_branch
      %32 = sbr.rel (0) target = $region29
    $region28: #{tpu_custom_call.1} parent=1 // pred_region
      _
    $region29: #{tpu_custom_call.1} parent=1 // pred_fallthru
      _
    // Predicated region
    $region30: #{tpu_custom_call.1} parent=1 // pred_check
      _
    $region31: #{tpu_custom_call.1} parent=1 // pred_check_branch
      %34 = sbr.rel (0) target = $region33
    $region32: #{tpu_custom_call.1} parent=1 // pred_region
      _
    $region33: #{tpu_custom_call.1} parent=1 // pred_fallthru
      _
    // Predicated region
    $region34: #{tpu_custom_call.1} parent=1 // pred_check
      _
    $region35: #{tpu_custom_call.1} parent=1 // pred_check_branch
      %36 = sbr.rel (0) target = $region37
    $region36: #{tpu_custom_call.1} parent=1 // pred_region
      _
    $region37: #{tpu_custom_call.1} parent=1 // pred_fallthru
      _
    // Predicated region
    $region38: #{tpu_custom_call.1} parent=1 // pred_check
      _
    $region39: #{tpu_custom_call.1} parent=1 // pred_check_branch
      %38 = sbr.rel (0) target = $region41
    $region40: #{tpu_custom_call.1} parent=1 // pred_region
      _
    $region41: #{tpu_custom_call.1} parent=1 // pred_fallthru
      _
    // Predicated region
    $region42: #{tpu_custom_call.1} parent=1 // pred_check
      _
    $region43: #{tpu_custom_call.1} parent=1 // pred_check_branch
      %40 = sbr.rel (0) target = $region45
    $region44: #{tpu_custom_call.1} parent=1 // pred_region
      _
    $region45: #{tpu_custom_call.1} parent=1 // pred_fallthru
      _
    // Predicated region
    $region46: #{tpu_custom_call.1} parent=1 // pred_check
      _
    $region47: #{tpu_custom_call.1} parent=1 // pred_check_branch
      %42 = sbr.rel (0) target = $region49
    $region48: #{tpu_custom_call.1} parent=1 // pred_region
      _
    $region49: #{tpu_custom_call.1} parent=1 // pred_fallthru
      _
    // Predicated region
    $region50: #{tpu_custom_call.1} parent=1 // pred_check
      _
    $region51: #{tpu_custom_call.1} parent=1 // pred_check_branch
      %44 = sbr.rel (0) target = $region53
    $region52: #{tpu_custom_call.1} parent=1 // pred_region
      _
    $region53: #{tpu_custom_call.1} parent=1 // pred_fallthru
      _
    %v45 = vld [vmem:[%s0] sm:$0xff]
    %v46 = vld [vmem:[%s0 + $0x8] sm:$0xff]
    %v47 = vld [vmem:[%s0 + $0x10] sm:$0xff]
    %v48 = vld [vmem:[%s0 + $0x18] sm:$0xff]
    %v49 = vld [vmem:[%s0 + $0x20] sm:$0xff]
    %v50 = vld [vmem:[%s0 + $0x28] sm:$0xff]
    %v51 = vld [vmem:[%s0 + $0x30] sm:$0xff]
    %v52 = vld [vmem:[%s0 + $0x38] sm:$0xff]
    %v53 = vld [vmem:[%s0 + $0x40] sm:$0xff]
    %v54 = vld [vmem:[%s0 + $0x48] sm:$0xff]
    %v55 = vld [vmem:[%s0 + $0x50] sm:$0xff]
    %v56 = vld [vmem:[%s0 + $0x58] sm:$0xff]
    %v57 = vld [vmem:[%s0 + $0x60] sm:$0xff]
    %v58 = vld [vmem:[%s0 + $0x68] sm:$0xff]
    %v59 = vld [vmem:[%s0 + $0x70] sm:$0xff]
    %v60 = vld [vmem:[%s0 + $0x78] sm:$0xff]
    %s61 = scalar_lea.vmem %s0, 128
    %v62 = vld [vmem:[%s61] sm:$0xff]
    %v63 = vld [vmem:[%s61 + $0x8] sm:$0xff]
    %v64 = vld [vmem:[%s61 + $0x10] sm:$0xff]
    %v65 = vld [vmem:[%s61 + $0x18] sm:$0xff]
    %v66 = vld [vmem:[%s61 + $0x20] sm:$0xff]
    %v67 = vld [vmem:[%s61 + $0x28] sm:$0xff]
    %v68 = vld [vmem:[%s61 + $0x30] sm:$0xff]
    %v69 = vld [vmem:[%s61 + $0x38] sm:$0xff]
    %v70 = vld [vmem:[%s61 + $0x40] sm:$0xff]
    %v71 = vld [vmem:[%s61 + $0x48] sm:$0xff]
    %v72 = vld [vmem:[%s61 + $0x50] sm:$0xff]
    %v73 = vld [vmem:[%s61 + $0x58] sm:$0xff]
    %v74 = vld [vmem:[%s61 + $0x60] sm:$0xff]
    %v75 = vld [vmem:[%s61 + $0x68] sm:$0xff]
    %v76 = vld [vmem:[%s61 + $0x70] sm:$0xff]
    %v77 = vld [vmem:[%s61 + $0x78] sm:$0xff]
    %v78 = vmax.f32 %v45, %v62
    %v79 = vmax.f32 %v46, %v63
    %v80 = vmax.f32 %v47, %v64
    %v81 = vmax.f32 %v48, %v65
    %v82 = vmax.f32 %v49, %v66
    %v83 = vmax.f32 %v50, %v67
    %v84 = vmax.f32 %v51, %v68
    %v85 = vmax.f32 %v52, %v69
    %v86 = vmax.f32 %v53, %v70
    %v87 = vmax.f32 %v54, %v71
    %v88 = vmax.f32 %v55, %v72
    %v89 = vmax.f32 %v56, %v73
    %v90 = vmax.f32 %v57, %v74
    %v91 = vmax.f32 %v58, %v75
    %v92 = vmax.f32 %v59, %v76
    %v93 = vmax.f32 %v60, %v77
    %s94 = scalar_lea.vmem %s0, 256
    %v95 = vld [vmem:[%s94] sm:$0xff]
    %v96 = vld [vmem:[%s94 + $0x8] sm:$0xff]
    %v97 = vld [vmem:[%s94 + $0x10] sm:$0xff]
    %v98 = vld [vmem:[%s94 + $0x18] sm:$0xff]
    %v99 = vld [vmem:[%s94 + $0x20] sm:$0xff]
    %v100 = vld [vmem:[%s94 + $0x28] sm:$0xff]
    %v101 = vld [vmem:[%s94 + $0x30] sm:$0xff]
    %v102 = vld [vmem:[%s94 + $0x38] sm:$0xff]
    %v103 = vld [vmem:[%s94 + $0x40] sm:$0xff]
    %v104 = vld [vmem:[%s94 + $0x48] sm:$0xff]
    %v105 = vld [vmem:[%s94 + $0x50] sm:$0xff]
    %v106 = vld [vmem:[%s94 + $0x58] sm:$0xff]
    %v107 = vld [vmem:[%s94 + $0x60] sm:$0xff]
    %v108 = vld [vmem:[%s94 + $0x68] sm:$0xff]
    %v109 = vld [vmem:[%s94 + $0x70] sm:$0xff]
    %v110 = vld [vmem:[%s94 + $0x78] sm:$0xff]
    %s111 = scalar_lea.vmem %s0, 384
    %v112 = vld [vmem:[%s111] sm:$0xff]
    %v113 = vld [vmem:[%s111 + $0x8] sm:$0xff]
    %v114 = vld [vmem:[%s111 + $0x10] sm:$0xff]
    %v115 = vld [vmem:[%s111 + $0x18] sm:$0xff]
    %v116 = vld [vmem:[%s111 + $0x20] sm:$0xff]
    %v117 = vld [vmem:[%s111 + $0x28] sm:$0xff]
    %v118 = vld [vmem:[%s111 + $0x30] sm:$0xff]
    %v119 = vld [vmem:[%s111 + $0x38] sm:$0xff]
    %v120 = vld [vmem:[%s111 + $0x40] sm:$0xff]
    %v121 = vld [vmem:[%s111 + $0x48] sm:$0xff]
    %v122 = vld [vmem:[%s111 + $0x50] sm:$0xff]
    %v123 = vld [vmem:[%s111 + $0x58] sm:$0xff]
    %v124 = vld [vmem:[%s111 + $0x60] sm:$0xff]
    %v125 = vld [vmem:[%s111 + $0x68] sm:$0xff]
    %v126 = vld [vmem:[%s111 + $0x70] sm:$0xff]
    %v127 = vld [vmem:[%s111 + $0x78] sm:$0xff]
    %v128 = vmax.f32 %v95, %v112
    %v129 = vmax.f32 %v96, %v113
    %v130 = vmax.f32 %v97, %v114
    %v131 = vmax.f32 %v98, %v115
    %v132 = vmax.f32 %v99, %v116
    %v133 = vmax.f32 %v100, %v117
    %v134 = vmax.f32 %v101, %v118
    %v135 = vmax.f32 %v102, %v119
    %v136 = vmax.f32 %v103, %v120
    %v137 = vmax.f32 %v104, %v121
    %v138 = vmax.f32 %v105, %v122
    %v139 = vmax.f32 %v106, %v123
    %v140 = vmax.f32 %v107, %v124
    %v141 = vmax.f32 %v108, %v125
    %v142 = vmax.f32 %v109, %v126
    %v143 = vmax.f32 %v110, %v127
    %v144 = vmax.f32 %v78, %v128
    %v145 = vmax.f32 %v79, %v129
    %v146 = vmax.f32 %v80, %v130
    %v147 = vmax.f32 %v81, %v131
    %v148 = vmax.f32 %v82, %v132
    %v149 = vmax.f32 %v83, %v133
    %v150 = vmax.f32 %v84, %v134
    %v151 = vmax.f32 %v85, %v135
    %v152 = vmax.f32 %v86, %v136
    %v153 = vmax.f32 %v87, %v137
    %v154 = vmax.f32 %v88, %v138
    %v155 = vmax.f32 %v89, %v139
    %v156 = vmax.f32 %v90, %v140
    %v157 = vmax.f32 %v91, %v141
    %v158 = vmax.f32 %v92, %v142
    %v159 = vmax.f32 %v93, %v143
    %vm160 = vcmask 64512
    %161 = vst.msk [vmem:[#allocation2] sm:$0xff] %vm160, 0.0
    %vm162 = vcmask 58368
    %163 = vst.msk [vmem:[#allocation2 + $0x8] sm:$0x3] %vm162, 0.0
    %164 = vst.msk [vmem:[#allocation2 + $0xa0] sm:$0xff] %vm160, 0.0
    %165 = vst.msk [vmem:[#allocation2 + $0xa8] sm:$0x3] %vm162, 0.0
    %s166 = scalar_lea.vmem [#allocation2], 144
    %167 = vst.msk [vmem:[%s166] sm:$0xff] %vm160, 0.0
    %168 = vst.msk [vmem:[%s166 + $0x8] sm:$0x3] %vm162, 0.0
    %169 = vst.msk [vmem:[%s166 + $0xa0] sm:$0xff] %vm160, 0.0
    %170 = vst.msk [vmem:[%s166 + $0xa8] sm:$0x3] %vm162, 0.0
    %s171 = scalar_lea.vmem [#allocation2], 16
    %vm172 = vcmask 57344
    %173 = vst.msk [vmem:[%s171] sm:$0x1] %vm172, 0.0
    %174 = vst.msk [vmem:[%s171 + $0x10] sm:$0x1] %vm172, 0.0
    %175 = vst.msk [vmem:[%s171 + $0x20] sm:$0x1] %vm172, 0.0
    %176 = vst.msk [vmem:[%s171 + $0x30] sm:$0x1] %vm172, 0.0
    %177 = vst.msk [vmem:[%s171 + $0x40] sm:$0x1] %vm172, 0.0
    %178 = vst.msk [vmem:[%s171 + $0x50] sm:$0x1] %vm172, 0.0
    %179 = vst.msk [vmem:[%s171 + $0x60] sm:$0x1] %vm172, 0.0
    %180 = vst.msk [vmem:[%s171 + $0x70] sm:$0x1] %vm172, 0.0
    %181 = vst.msk [vmem:[%s171 + $0xa0] sm:$0x1] %vm172, 0.0
    %182 = vst.msk [vmem:[%s171 + $0xb0] sm:$0x1] %vm172, 0.0
    %183 = vst.msk [vmem:[%s171 + $0xc0] sm:$0x1] %vm172, 0.0
    %184 = vst.msk [vmem:[%s171 + $0xd0] sm:$0x1] %vm172, 0.0
    %185 = vst.msk [vmem:[%s171 + $0xe0] sm:$0x1] %vm172, 0.0
    %186 = vst.msk [vmem:[%s171 + $0xf0] sm:$0x1] %vm172, 0.0
    %187 = vst.msk [vmem:[%s171 + $0x100] sm:$0x1] %vm172, 0.0
    %188 = vst.msk [vmem:[%s171 + $0x110] sm:$0x1] %vm172, 0.0
    %189 = vst.msk [vmem:[%s171 + $0x9] sm:$0x1] %vm172, 0.0
    %190 = vst.msk [vmem:[%s171 + $0x19] sm:$0x1] %vm172, 0.0
    %191 = vst.msk [vmem:[%s171 + $0x29] sm:$0x1] %vm172, 0.0
    %192 = vst.msk [vmem:[%s171 + $0x39] sm:$0x1] %vm172, 0.0
    %193 = vst.msk [vmem:[%s171 + $0x49] sm:$0x1] %vm172, 0.0
    %194 = vst.msk [vmem:[%s171 + $0x59] sm:$0x1] %vm172, 0.0
    %195 = vst.msk [vmem:[%s171 + $0x69] sm:$0x1] %vm172, 0.0
    %196 = vst.msk [vmem:[%s171 + $0x79] sm:$0x1] %vm172, 0.0
    %197 = vst.msk [vmem:[%s171 + $0xa9] sm:$0x1] %vm172, 0.0
    %198 = vst.msk [vmem:[%s171 + $0xb9] sm:$0x1] %vm172, 0.0
    %199 = vst.msk [vmem:[%s171 + $0xc9] sm:$0x1] %vm172, 0.0
    %200 = vst.msk [vmem:[%s171 + $0xd9] sm:$0x1] %vm172, 0.0
    %201 = vst.msk [vmem:[%s171 + $0xe9] sm:$0x1] %vm172, 0.0
    %202 = vst.msk [vmem:[%s171 + $0xf9] sm:$0x1] %vm172, 0.0
    %203 = vst.msk [vmem:[%s171 + $0x109] sm:$0x1] %vm172, 0.0
    %204 = vst.msk [vmem:[%s171 + $0x119] sm:$0x1] %vm172, 0.0
    %v205 = vld [vmem:[%s1] sm:$0xff]
    %v206 = vld [vmem:[%s1 + $0x8] sm:$0x1]
    %v207 = vld [vmem:[%s2] sm:$0x1]
    %v208 = vld [vmem:[%s3] sm:$0xf]
    %v209 = vld [vmem:[%s4] sm:$0x1]
    %v210 = vld [vmem:[%s5] sm:$0x1]
    %v211 = vld [vmem:[%s6] sm:$0x1]
    %vm212 = vcmask 31744
    %213 = vst.msk [vmem:[%s171 + $0x1] sm:$0xff] %vm212, %v144
    %214 = vst.msk [vmem:[%s171 + $0x11] sm:$0xff] %vm212, %v145
    %215 = vst.msk [vmem:[%s171 + $0x21] sm:$0xff] %vm212, %v146
    %216 = vst.msk [vmem:[%s171 + $0x31] sm:$0xff] %vm212, %v147
    %217 = vst.msk [vmem:[%s171 + $0x41] sm:$0xff] %vm212, %v148
    %218 = vst.msk [vmem:[%s171 + $0x51] sm:$0xff] %vm212, %v149
    %219 = vst.msk [vmem:[%s171 + $0x61] sm:$0xff] %vm212, %v150
    %220 = vst.msk [vmem:[%s171 + $0x71] sm:$0xff] %vm212, %v151
    %221 = vst.msk [vmem:[%s171 + $0xa1] sm:$0xff] %vm212, %v152
    %222 = vst.msk [vmem:[%s171 + $0xb1] sm:$0xff] %vm212, %v153
    %223 = vst.msk [vmem:[%s171 + $0xc1] sm:$0xff] %vm212, %v154
    %224 = vst.msk [vmem:[%s171 + $0xd1] sm:$0xff] %vm212, %v155
    %225 = vst.msk [vmem:[%s171 + $0xe1] sm:$0xff] %vm212, %v156
    %226 = vst.msk [vmem:[%s171 + $0xf1] sm:$0xff] %vm212, %v157
    %227 = vst.msk [vmem:[%s171 + $0x101] sm:$0xff] %vm212, %v158
    %228 = vst.msk [vmem:[%s171 + $0x111] sm:$0xff] %vm212, %v159
    %v229 = vperm.slane %v205, 4
    %v230 = vmul.f32 %v144, %v229
    %v231 = vmul.f32 %v145, %v229
    %v232 = vmul.f32 %v146, %v229
    %v233 = vmul.f32 %v147, %v229
    %v234 = vmul.f32 %v148, %v229
    %v235 = vmul.f32 %v149, %v229
    %v236 = vmul.f32 %v150, %v229
    %v237 = vmul.f32 %v151, %v229
    %v238 = vmul.f32 %v152, %v229
    %v239 = vmul.f32 %v153, %v229
    %v240 = vmul.f32 %v154, %v229
    %v241 = vmul.f32 %v155, %v229
    %v242 = vmul.f32 %v156, %v229
    %v243 = vmul.f32 %v157, %v229
    %v244 = vmul.f32 %v158, %v229
    %v245 = vmul.f32 %v159, %v229
    %v246 = vld [vmem:[#allocation2] sm:$0xff]
    %v247 = vld [vmem:[#allocation2 + $0x10] sm:$0xff]
    %v248 = vld [vmem:[#allocation2 + $0x20] sm:$0xff]
    %v249 = vld [vmem:[#allocation2 + $0x30] sm:$0xff]
    %v250 = vld [vmem:[#allocation2 + $0x40] sm:$0xff]
    %v251 = vld [vmem:[#allocation2 + $0x50] sm:$0xff]
    %v252 = vld [vmem:[#allocation2 + $0x60] sm:$0xff]
    %v253 = vld [vmem:[#allocation2 + $0x70] sm:$0xff]
    %v254 = vld [vmem:[#allocation2 + $0xa0] sm:$0xff]
    %v255 = vld [vmem:[#allocation2 + $0xb0] sm:$0xff]
    %v256 = vld [vmem:[#allocation2 + $0xc0] sm:$0xff]
    %v257 = vld [vmem:[#allocation2 + $0xd0] sm:$0xff]
    %v258 = vld [vmem:[#allocation2 + $0xe0] sm:$0xff]
    %v259 = vld [vmem:[#allocation2 + $0xf0] sm:$0xff]
    %v260 = vld [vmem:[#allocation2 + $0x100] sm:$0xff]
    %v261 = vld [vmem:[#allocation2 + $0x110] sm:$0xff]
    %v262 = vperm.slane %v205, 0
    %v263 = vmul.f32 %v246, %v262
    %v264 = vmul.f32 %v247, %v262
    %v265 = vmul.f32 %v248, %v262
    %v266 = vmul.f32 %v249, %v262
    %v267 = vmul.f32 %v250, %v262
    %v268 = vmul.f32 %v251, %v262
    %v269 = vmul.f32 %v252, %v262
    %v270 = vmul.f32 %v253, %v262
    %v271 = vmul.f32 %v254, %v262
    %v272 = vmul.f32 %v255, %v262
    %v273 = vmul.f32 %v256, %v262
    %v274 = vmul.f32 %v257, %v262
    %v275 = vmul.f32 %v258, %v262
    %v276 = vmul.f32 %v259, %v262
    %v277 = vmul.f32 %v260, %v262
    %v278 = vmul.f32 %v261, %v262
    %v279 = vadd.f32 %v230, %v263
    %v280 = vadd.f32 %v231, %v264
    %v281 = vadd.f32 %v232, %v265
    %v282 = vadd.f32 %v233, %v266
    %v283 = vadd.f32 %v234, %v267
    %v284 = vadd.f32 %v235, %v268
    %v285 = vadd.f32 %v236, %v269
    %v286 = vadd.f32 %v237, %v270
    %v287 = vadd.f32 %v238, %v271
    %v288 = vadd.f32 %v239, %v272
    %v289 = vadd.f32 %v240, %v273
    %v290 = vadd.f32 %v241, %v274
    %v291 = vadd.f32 %v242, %v275
    %v292 = vadd.f32 %v243, %v276
    %v293 = vadd.f32 %v244, %v277
    %v294 = vadd.f32 %v245, %v278
    %v295 = vld [vmem:[#allocation2 + $0x1] sm:$0xff]
    %v296 = vld [vmem:[#allocation2 + $0x11] sm:$0xff]
    %v297 = vld [vmem:[#allocation2 + $0x21] sm:$0xff]
    %v298 = vld [vmem:[#allocation2 + $0x31] sm:$0xff]
    %v299 = vld [vmem:[#allocation2 + $0x41] sm:$0xff]
    %v300 = vld [vmem:[#allocation2 + $0x51] sm:$0xff]
    %v301 = vld [vmem:[#allocation2 + $0x61] sm:$0xff]
    %v302 = vld [vmem:[#allocation2 + $0x71] sm:$0xff]
    %v303 = vld [vmem:[#allocation2 + $0xa1] sm:$0xff]
    %v304 = vld [vmem:[#allocation2 + $0xb1] sm:$0xff]
    %v305 = vld [vmem:[#allocation2 + $0xc1] sm:$0xff]
    %v306 = vld [vmem:[#allocation2 + $0xd1] sm:$0xff]
    %v307 = vld [vmem:[#allocation2 + $0xe1] sm:$0xff]
    %v308 = vld [vmem:[#allocation2 + $0xf1] sm:$0xff]
    %v309 = vld [vmem:[#allocation2 + $0x101] sm:$0xff]
    %v310 = vld [vmem:[#allocation2 + $0x111] sm:$0xff]
    %v311 = vperm.slane %v205, 1
    %v312 = vmul.f32 %v295, %v311
    %v313 = vmul.f32 %v296, %v311
    %v314 = vmul.f32 %v297, %v311
    %v315 = vmul.f32 %v298, %v311
    %v316 = vmul.f32 %v299, %v311
    %v317 = vmul.f32 %v300, %v311
    %v318 = vmul.f32 %v301, %v311
    %v319 = vmul.f32 %v302, %v311
    %v320 = vmul.f32 %v303, %v311
    %v321 = vmul.f32 %v304, %v311
    %v322 = vmul.f32 %v305, %v311
    %v323 = vmul.f32 %v306, %v311
    %v324 = vmul.f32 %v307, %v311
    %v325 = vmul.f32 %v308, %v311
    %v326 = vmul.f32 %v309, %v311
    %v327 = vmul.f32 %v310, %v311
    %v328 = vadd.f32 %v279, %v312
    %v329 = vadd.f32 %v280, %v313
    %v330 = vadd.f32 %v281, %v314
    %v331 = vadd.f32 %v282, %v315
    %v332 = vadd.f32 %v283, %v316
    %v333 = vadd.f32 %v284, %v317
    %v334 = vadd.f32 %v285, %v318
    %v335 = vadd.f32 %v286, %v319
    %v336 = vadd.f32 %v287, %v320
    %v337 = vadd.f32 %v288, %v321
    %v338 = vadd.f32 %v289, %v322
    %v339 = vadd.f32 %v290, %v323
    %v340 = vadd.f32 %v291, %v324
    %v341 = vadd.f32 %v292, %v325
    %v342 = vadd.f32 %v293, %v326
    %v343 = vadd.f32 %v294, %v327
    %v344 = vld [vmem:[#allocation2 + $0x2] sm:$0xff]
    %v345 = vld [vmem:[#allocation2 + $0x12] sm:$0xff]
    %v346 = vld [vmem:[#allocation2 + $0x22] sm:$0xff]
    %v347 = vld [vmem:[#allocation2 + $0x32] sm:$0xff]
    %v348 = vld [vmem:[#allocation2 + $0x42] sm:$0xff]
    %v349 = vld [vmem:[#allocation2 + $0x52] sm:$0xff]
    %v350 = vld [vmem:[#allocation2 + $0x62] sm:$0xff]
    %v351 = vld [vmem:[#allocation2 + $0x72] sm:$0xff]
    %v352 = vld [vmem:[#allocation2 + $0xa2] sm:$0xff]
    %v353 = vld [vmem:[#allocation2 + $0xb2] sm:$0xff]
    %v354 = vld [vmem:[#allocation2 + $0xc2] sm:$0xff]
    %v355 = vld [vmem:[#allocation2 + $0xd2] sm:$0xff]
    %v356 = vld [vmem:[#allocation2 + $0xe2] sm:$0xff]
    %v357 = vld [vmem:[#allocation2 + $0xf2] sm:$0xff]
    %v358 = vld [vmem:[#allocation2 + $0x102] sm:$0xff]
    %v359 = vld [vmem:[#allocation2 + $0x112] sm:$0xff]
    %v360 = vperm.slane %v205, 2
    %v361 = vmul.f32 %v344, %v360
    %v362 = vmul.f32 %v345, %v360
    %v363 = vmul.f32 %v346, %v360
    %v364 = vmul.f32 %v347, %v360
    %v365 = vmul.f32 %v348, %v360
    %v366 = vmul.f32 %v349, %v360
    %v367 = vmul.f32 %v350, %v360
    %v368 = vmul.f32 %v351, %v360
    %v369 = vmul.f32 %v352, %v360
    %v370 = vmul.f32 %v353, %v360
    %v371 = vmul.f32 %v354, %v360
    %v372 = vmul.f32 %v355, %v360
    %v373 = vmul.f32 %v356, %v360
    %v374 = vmul.f32 %v357, %v360
    %v375 = vmul.f32 %v358, %v360
    %v376 = vmul.f32 %v359, %v360
    %v377 = vadd.f32 %v328, %v361
    %v378 = vadd.f32 %v329, %v362
    %v379 = vadd.f32 %v330, %v363
    %v380 = vadd.f32 %v331, %v364
    %v381 = vadd.f32 %v332, %v365
    %v382 = vadd.f32 %v333, %v366
    %v383 = vadd.f32 %v334, %v367
    %v384 = vadd.f32 %v335, %v368
    %v385 = vadd.f32 %v336, %v369
    %v386 = vadd.f32 %v337, %v370
    %v387 = vadd.f32 %v338, %v371
    %v388 = vadd.f32 %v339, %v372
    %v389 = vadd.f32 %v340, %v373
    %v390 = vadd.f32 %v341, %v374
    %v391 = vadd.f32 %v342, %v375
    %v392 = vadd.f32 %v343, %v376
    %v393 = vld [vmem:[%s171] sm:$0xff]
    %v394 = vld [vmem:[%s171 + $0x10] sm:$0xff]
    %v395 = vld [vmem:[%s171 + $0x20] sm:$0xff]
    %v396 = vld [vmem:[%s171 + $0x30] sm:$0xff]
    %v397 = vld [vmem:[%s171 + $0x40] sm:$0xff]
    %v398 = vld [vmem:[%s171 + $0x50] sm:$0xff]
    %v399 = vld [vmem:[%s171 + $0x60] sm:$0xff]
    %v400 = vld [vmem:[%s171 + $0x70] sm:$0xff]
    %v401 = vld [vmem:[%s171 + $0xa0] sm:$0xff]
    %v402 = vld [vmem:[%s171 + $0xb0] sm:$0xff]
    %v403 = vld [vmem:[%s171 + $0xc0] sm:$0xff]
    %v404 = vld [vmem:[%s171 + $0xd0] sm:$0xff]
    %v405 = vld [vmem:[%s171 + $0xe0] sm:$0xff]
    %v406 = vld [vmem:[%s171 + $0xf0] sm:$0xff]
    %v407 = vld [vmem:[%s171 + $0x100] sm:$0xff]
    %v408 = vld [vmem:[%s171 + $0x110] sm:$0xff]
    %v409 = vperm.slane %v205, 3
    %v410 = vmul.f32 %v393, %v409
    %v411 = vmul.f32 %v394, %v409
    %v412 = vmul.f32 %v395, %v409
    %v413 = vmul.f32 %v396, %v409
    %v414 = vmul.f32 %v397, %v409
    %v415 = vmul.f32 %v398, %v409
    %v416 = vmul.f32 %v399, %v409
    %v417 = vmul.f32 %v400, %v409
    %v418 = vmul.f32 %v401, %v409
    %v419 = vmul.f32 %v402, %v409
    %v420 = vmul.f32 %v403, %v409
    %v421 = vmul.f32 %v404, %v409
    %v422 = vmul.f32 %v405, %v409
    %v423 = vmul.f32 %v406, %v409
    %v424 = vmul.f32 %v407, %v409
    %v425 = vmul.f32 %v408, %v409
    %v426 = vadd.f32 %v377, %v410
    %v427 = vadd.f32 %v378, %v411
    %v428 = vadd.f32 %v379, %v412
    %v429 = vadd.f32 %v380, %v413
    %v430 = vadd.f32 %v381, %v414
    %v431 = vadd.f32 %v382, %v415
    %v432 = vadd.f32 %v383, %v416
    %v433 = vadd.f32 %v384, %v417
    %v434 = vadd.f32 %v385, %v418
    %v435 = vadd.f32 %v386, %v419
    %v436 = vadd.f32 %v387, %v420
    %v437 = vadd.f32 %v388, %v421
    %v438 = vadd.f32 %v389, %v422
    %v439 = vadd.f32 %v390, %v423
    %v440 = vadd.f32 %v391, %v424
    %v441 = vadd.f32 %v392, %v425
    %v442 = vld [vmem:[%s171 + $0x2] sm:$0xff]
    %v443 = vld [vmem:[%s171 + $0x12] sm:$0xff]
    %v444 = vld [vmem:[%s171 + $0x22] sm:$0xff]
    %v445 = vld [vmem:[%s171 + $0x32] sm:$0xff]
    %v446 = vld [vmem:[%s171 + $0x42] sm:$0xff]
    %v447 = vld [vmem:[%s171 + $0x52] sm:$0xff]
    %v448 = vld [vmem:[%s171 + $0x62] sm:$0xff]
    %v449 = vld [vmem:[%s171 + $0x72] sm:$0xff]
    %v450 = vld [vmem:[%s171 + $0xa2] sm:$0xff]
    %v451 = vld [vmem:[%s171 + $0xb2] sm:$0xff]
    %v452 = vld [vmem:[%s171 + $0xc2] sm:$0xff]
    %v453 = vld [vmem:[%s171 + $0xd2] sm:$0xff]
    %v454 = vld [vmem:[%s171 + $0xe2] sm:$0xff]
    %v455 = vld [vmem:[%s171 + $0xf2] sm:$0xff]
    %v456 = vld [vmem:[%s171 + $0x102] sm:$0xff]
    %v457 = vld [vmem:[%s171 + $0x112] sm:$0xff]
    %v458 = vperm.slane %v205, 5
    %v459 = vmul.f32 %v442, %v458
    %v460 = vmul.f32 %v443, %v458
    %v461 = vmul.f32 %v444, %v458
    %v462 = vmul.f32 %v445, %v458
    %v463 = vmul.f32 %v446, %v458
    %v464 = vmul.f32 %v447, %v458
    %v465 = vmul.f32 %v448, %v458
    %v466 = vmul.f32 %v449, %v458
    %v467 = vmul.f32 %v450, %v458
    %v468 = vmul.f32 %v451, %v458
    %v469 = vmul.f32 %v452, %v458
    %v470 = vmul.f32 %v453, %v458
    %v471 = vmul.f32 %v454, %v458
    %v472 = vmul.f32 %v455, %v458
    %v473 = vmul.f32 %v456, %v458
    %v474 = vmul.f32 %v457, %v458
    %v475 = vadd.f32 %v426, %v459
    %v476 = vadd.f32 %v427, %v460
    %v477 = vadd.f32 %v428, %v461
    %v478 = vadd.f32 %v429, %v462
    %v479 = vadd.f32 %v430, %v463
    %v480 = vadd.f32 %v431, %v464
    %v481 = vadd.f32 %v432, %v465
    %v482 = vadd.f32 %v433, %v466
    %v483 = vadd.f32 %v434, %v467
    %v484 = vadd.f32 %v435, %v468
    %v485 = vadd.f32 %v436, %v469
    %v486 = vadd.f32 %v437, %v470
    %v487 = vadd.f32 %v438, %v471
    %v488 = vadd.f32 %v439, %v472
    %v489 = vadd.f32 %v440, %v473
    %v490 = vadd.f32 %v441, %v474
    %s491 = scalar_lea.vmem [#allocation2], 32
    %v492 = vld [vmem:[%s491] sm:$0xff]
    %v493 = vld [vmem:[%s491 + $0x10] sm:$0xff]
    %v494 = vld [vmem:[%s491 + $0x20] sm:$0xff]
    %v495 = vld [vmem:[%s491 + $0x30] sm:$0xff]
    %v496 = vld [vmem:[%s491 + $0x40] sm:$0xff]
    %v497 = vld [vmem:[%s491 + $0x50] sm:$0xff]
    %v498 = vld [vmem:[%s491 + $0x60] sm:$0xff]
    %v499 = vld [vmem:[%s491 + $0x70] sm:$0xff]
    %v500 = vld [vmem:[%s491 + $0xa0] sm:$0xff]
    %v501 = vld [vmem:[%s491 + $0xb0] sm:$0xff]
    %v502 = vld [vmem:[%s491 + $0xc0] sm:$0xff]
    %v503 = vld [vmem:[%s491 + $0xd0] sm:$0xff]
    %v504 = vld [vmem:[%s491 + $0xe0] sm:$0xff]
    %v505 = vld [vmem:[%s491 + $0xf0] sm:$0xff]
    %v506 = vld [vmem:[%s491 + $0x100] sm:$0xff]
    %v507 = vld [vmem:[%s491 + $0x110] sm:$0xff]
    %v508 = vperm.slane %v205, 6
    %v509 = vmul.f32 %v492, %v508
    %v510 = vmul.f32 %v493, %v508
    %v511 = vmul.f32 %v494, %v508
    %v512 = vmul.f32 %v495, %v508
    %v513 = vmul.f32 %v496, %v508
    %v514 = vmul.f32 %v497, %v508
    %v515 = vmul.f32 %v498, %v508
    %v516 = vmul.f32 %v499, %v508
    %v517 = vmul.f32 %v500, %v508
    %v518 = vmul.f32 %v501, %v508
    %v519 = vmul.f32 %v502, %v508
    %v520 = vmul.f32 %v503, %v508
    %v521 = vmul.f32 %v504, %v508
    %v522 = vmul.f32 %v505, %v508
    %v523 = vmul.f32 %v506, %v508
    %v524 = vmul.f32 %v507, %v508
    %v525 = vadd.f32 %v475, %v509
    %v526 = vadd.f32 %v476, %v510
    %v527 = vadd.f32 %v477, %v511
    %v528 = vadd.f32 %v478, %v512
    %v529 = vadd.f32 %v479, %v513
    %v530 = vadd.f32 %v480, %v514
    %v531 = vadd.f32 %v481, %v515
    %v532 = vadd.f32 %v482, %v516
    %v533 = vadd.f32 %v483, %v517
    %v534 = vadd.f32 %v484, %v518
    %v535 = vadd.f32 %v485, %v519
    %v536 = vadd.f32 %v486, %v520
    %v537 = vadd.f32 %v487, %v521
    %v538 = vadd.f32 %v488, %v522
    %v539 = vadd.f32 %v489, %v523
    %v540 = vadd.f32 %v490, %v524
    %v541 = vld [vmem:[%s491 + $0x1] sm:$0xff]
    %v542 = vld [vmem:[%s491 + $0x11] sm:$0xff]
    %v543 = vld [vmem:[%s491 + $0x21] sm:$0xff]
    %v544 = vld [vmem:[%s491 + $0x31] sm:$0xff]
    %v545 = vld [vmem:[%s491 + $0x41] sm:$0xff]
    %v546 = vld [vmem:[%s491 + $0x51] sm:$0xff]
    %v547 = vld [vmem:[%s491 + $0x61] sm:$0xff]
    %v548 = vld [vmem:[%s491 + $0x71] sm:$0xff]
    %v549 = vld [vmem:[%s491 + $0xa1] sm:$0xff]
    %v550 = vld [vmem:[%s491 + $0xb1] sm:$0xff]
    %v551 = vld [vmem:[%s491 + $0xc1] sm:$0xff]
    %v552 = vld [vmem:[%s491 + $0xd1] sm:$0xff]
    %v553 = vld [vmem:[%s491 + $0xe1] sm:$0xff]
    %v554 = vld [vmem:[%s491 + $0xf1] sm:$0xff]
    %v555 = vld [vmem:[%s491 + $0x101] sm:$0xff]
    %v556 = vld [vmem:[%s491 + $0x111] sm:$0xff]
    %v557 = vperm.slane %v205, 7
    %v558 = vmul.f32 %v541, %v557
    %v559 = vmul.f32 %v542, %v557
    %v560 = vmul.f32 %v543, %v557
    %v561 = vmul.f32 %v544, %v557
    %v562 = vmul.f32 %v545, %v557
    %v563 = vmul.f32 %v546, %v557
    %v564 = vmul.f32 %v547, %v557
    %v565 = vmul.f32 %v548, %v557
    %v566 = vmul.f32 %v549, %v557
    %v567 = vmul.f32 %v550, %v557
    %v568 = vmul.f32 %v551, %v557
    %v569 = vmul.f32 %v552, %v557
    %v570 = vmul.f32 %v553, %v557
    %v571 = vmul.f32 %v554, %v557
    %v572 = vmul.f32 %v555, %v557
    %v573 = vmul.f32 %v556, %v557
    %v574 = vadd.f32 %v525, %v558
    %v575 = vadd.f32 %v526, %v559
    %v576 = vadd.f32 %v527, %v560
    %v577 = vadd.f32 %v528, %v561
    %v578 = vadd.f32 %v529, %v562
    %v579 = vadd.f32 %v530, %v563
    %v580 = vadd.f32 %v531, %v564
    %v581 = vadd.f32 %v532, %v565
    %v582 = vadd.f32 %v533, %v566
    %v583 = vadd.f32 %v534, %v567
    %v584 = vadd.f32 %v535, %v568
    %v585 = vadd.f32 %v536, %v569
    %v586 = vadd.f32 %v537, %v570
    %v587 = vadd.f32 %v538, %v571
    %v588 = vadd.f32 %v539, %v572
    %v589 = vadd.f32 %v540, %v573
    %v590 = vld [vmem:[%s491 + $0x2] sm:$0xff]
    %v591 = vld [vmem:[%s491 + $0x12] sm:$0xff]
    %v592 = vld [vmem:[%s491 + $0x22] sm:$0xff]
    %v593 = vld [vmem:[%s491 + $0x32] sm:$0xff]
    %v594 = vld [vmem:[%s491 + $0x42] sm:$0xff]
    %v595 = vld [vmem:[%s491 + $0x52] sm:$0xff]
    %v596 = vld [vmem:[%s491 + $0x62] sm:$0xff]
    %v597 = vld [vmem:[%s491 + $0x72] sm:$0xff]
    %v598 = vld [vmem:[%s491 + $0xa2] sm:$0xff]
    %v599 = vld [vmem:[%s491 + $0xb2] sm:$0xff]
    %v600 = vld [vmem:[%s491 + $0xc2] sm:$0xff]
    %v601 = vld [vmem:[%s491 + $0xd2] sm:$0xff]
    %v602 = vld [vmem:[%s491 + $0xe2] sm:$0xff]
    %v603 = vld [vmem:[%s491 + $0xf2] sm:$0xff]
    %v604 = vld [vmem:[%s491 + $0x102] sm:$0xff]
    %v605 = vld [vmem:[%s491 + $0x112] sm:$0xff]
    %v606 = vperm.slane %v206, 0
    %v607 = vmul.f32 %v590, %v606
    %v608 = vmul.f32 %v591, %v606
    %v609 = vmul.f32 %v592, %v606
    %v610 = vmul.f32 %v593, %v606
    %v611 = vmul.f32 %v594, %v606
    %v612 = vmul.f32 %v595, %v606
    %v613 = vmul.f32 %v596, %v606
    %v614 = vmul.f32 %v597, %v606
    %v615 = vmul.f32 %v598, %v606
    %v616 = vmul.f32 %v599, %v606
    %v617 = vmul.f32 %v600, %v606
    %v618 = vmul.f32 %v601, %v606
    %v619 = vmul.f32 %v602, %v606
    %v620 = vmul.f32 %v603, %v606
    %v621 = vmul.f32 %v604, %v606
    %v622 = vmul.f32 %v605, %v606
    %v623 = vadd.f32 %v574, %v607
    %v624 = vadd.f32 %v575, %v608
    %v625 = vadd.f32 %v576, %v609
    %v626 = vadd.f32 %v577, %v610
    %v627 = vadd.f32 %v578, %v611
    %v628 = vadd.f32 %v579, %v612
    %v629 = vadd.f32 %v580, %v613
    %v630 = vadd.f32 %v581, %v614
    %v631 = vadd.f32 %v582, %v615
    %v632 = vadd.f32 %v583, %v616
    %v633 = vadd.f32 %v584, %v617
    %v634 = vadd.f32 %v585, %v618
    %v635 = vadd.f32 %v586, %v619
    %v636 = vadd.f32 %v587, %v620
    %v637 = vadd.f32 %v588, %v621
    %v638 = vadd.f32 %v589, %v622
    %v640 = vperm.slane %v207, 0
    %v642 = vadd.f32 %v623, %v640
    %v643 = vadd.f32 %v624, %v640
    %v644 = vadd.f32 %v625, %v640
    %v645 = vadd.f32 %v626, %v640
    %v646 = vadd.f32 %v627, %v640
    %v647 = vadd.f32 %v628, %v640
    %v648 = vadd.f32 %v629, %v640
    %v649 = vadd.f32 %v630, %v640
    %v650 = vadd.f32 %v631, %v640
    %v651 = vadd.f32 %v632, %v640
    %v652 = vadd.f32 %v633, %v640
    %v653 = vadd.f32 %v634, %v640
    %v654 = vadd.f32 %v635, %v640
    %v655 = vadd.f32 %v636, %v640
    %v656 = vadd.f32 %v637, %v640
    %v657 = vadd.f32 %v638, %v640
    %v659 = vperm.slane %v209, 0
    %v662 = vsel %vm212, %v642, 0
    %v665 = vsel %vm212, %v643, 0
    %v668 = vsel %vm212, %v644, 0
    %v671 = vsel %vm212, %v645, 0
    %v674 = vsel %vm212, %v646, 0
    %v677 = vsel %vm212, %v647, 0
    %v680 = vsel %vm212, %v648, 0
    %v683 = vsel %vm212, %v649, 0
    %v686 = vsel %vm212, %v650, 0
    %v689 = vsel %vm212, %v651, 0
    %v692 = vsel %vm212, %v652, 0
    %v695 = vsel %vm212, %v653, 0
    %v698 = vsel %vm212, %v654, 0
    %v701 = vsel %vm212, %v655, 0
    %v704 = vsel %vm212, %v656, 0
    %v707 = vsel %vm212, %v657, 0
    %vm709 = vcmask 1043456
    %v711 = vsel %vm709, %v208, 0
    %713 = vmatpush.msra.mxu0 0.0
    %714 = vmatpush.msra.mxu0 0.0
    %715 = vmatpush.msra.mxu0 0.0
    %716 = vmatpush.msra.mxu0 0.0
    %717 = vmatpush.msra.mxu0 0.0
    %718 = vmatpush.msra.mxu0 0.0
    %719 = vmatpush.msra.mxu0 0.0
    %720 = vmatpush.msra.mxu0 0.0
    %721 = vmatpush.msra.mxu0 0.0
    %722 = vmatpush.msra.mxu0 0.0
    %723 = vmatpush.msra.mxu0 0.0
    %724 = vmatpush.msra.mxu0 0.0
    %725 = vmatpush.msra.mxu0 0.0
    %726 = vmatpush.msra.mxu0 0.0
    %727 = vmatpush.msra.mxu0 0.0
    %728 = vmatpush.msra.mxu0 %v711
    %729 = vmatmul.f32.gmra.mxu0 %v662
    %v730 = vpop.f32.mrf.mxu0
    %v731 = vadd.f32 %v659, %v730
    %732 = vmatmul.f32.gmra.mxu0 %v665
    %v733 = vpop.f32.mrf.mxu0
    %v734 = vadd.f32 %v659, %v733
    %735 = vmatmul.f32.gmra.mxu0 %v668
    %v736 = vpop.f32.mrf.mxu0
    %v737 = vadd.f32 %v659, %v736
    %738 = vmatmul.f32.gmra.mxu0 %v671
    %v739 = vpop.f32.mrf.mxu0
    %v740 = vadd.f32 %v659, %v739
    %741 = vmatmul.f32.gmra.mxu0 %v674
    %v742 = vpop.f32.mrf.mxu0
    %v743 = vadd.f32 %v659, %v742
    %744 = vmatmul.f32.gmra.mxu0 %v677
    %v745 = vpop.f32.mrf.mxu0
    %v746 = vadd.f32 %v659, %v745
    %747 = vmatmul.f32.gmra.mxu0 %v680
    %v748 = vpop.f32.mrf.mxu0
    %v749 = vadd.f32 %v659, %v748
    %750 = vmatmul.f32.gmra.mxu0 %v683
    %v751 = vpop.f32.mrf.mxu0
    %v752 = vadd.f32 %v659, %v751
    %753 = vmatmul.f32.gmra.mxu0 %v686
    %v754 = vpop.f32.mrf.mxu0
    %v755 = vadd.f32 %v659, %v754
    %756 = vmatmul.f32.gmra.mxu0 %v689
    %v757 = vpop.f32.mrf.mxu0
    %v758 = vadd.f32 %v659, %v757
    %759 = vmatmul.f32.gmra.mxu0 %v692
    %v760 = vpop.f32.mrf.mxu0
    %v761 = vadd.f32 %v659, %v760
    %762 = vmatmul.f32.gmra.mxu0 %v695
    %v763 = vpop.f32.mrf.mxu0
    %v764 = vadd.f32 %v659, %v763
    %765 = vmatmul.f32.gmra.mxu0 %v698
    %v766 = vpop.f32.mrf.mxu0
    %v767 = vadd.f32 %v659, %v766
    %768 = vmatmul.f32.gmra.mxu0 %v701
    %v769 = vpop.f32.mrf.mxu0
    %v770 = vadd.f32 %v659, %v769
    %771 = vmatmul.f32.gmra.mxu0 %v704
    %v772 = vpop.f32.mrf.mxu0
    %v773 = vadd.f32 %v659, %v772
    %774 = vmatmul.f32.gmra.mxu0 %v707
    %v775 = vpop.f32.mrf.mxu0
    %v776 = vadd.f32 %v659, %v775
    %777 = vdwg.mxu0
    %778 = vmatpush.msra.mxu0 %v776
    %779 = vmatpush.msra.mxu0 %v773
    %780 = vmatpush.msra.mxu0 %v770
    %781 = vmatpush.msra.mxu0 %v767
    %782 = vmatpush.msra.mxu0 %v764
    %783 = vmatpush.msra.mxu0 %v761
    %784 = vmatpush.msra.mxu0 %v758
    %785 = vmatpush.msra.mxu0 %v755
    %786 = vmatpush.msra.mxu0 %v752
    %787 = vmatpush.msra.mxu0 %v749
    %788 = vmatpush.msra.mxu0 %v746
    %789 = vmatpush.msra.mxu0 %v743
    %790 = vmatpush.msra.mxu0 %v740
    %791 = vmatpush.msra.mxu0 %v737
    %792 = vmatpush.msra.mxu0 %v734
    %793 = vmatpush.msra.mxu0 %v731
    %794 = vmatmul.f32.gmra.mxu0 1.0
    %v795 = vpop.f32.mrf.mxu0
    %v796 = vadd.f32 0.0, %v795
    %797 = vdwg.mxu0
    %v798 = vmul.f32 %v731, %v731
    %v799 = vmul.f32 %v734, %v734
    %v800 = vmul.f32 %v737, %v737
    %v801 = vmul.f32 %v740, %v740
    %v802 = vmul.f32 %v743, %v743
    %v803 = vmul.f32 %v746, %v746
    %v804 = vmul.f32 %v749, %v749
    %v805 = vmul.f32 %v752, %v752
    %v806 = vmul.f32 %v755, %v755
    %v807 = vmul.f32 %v758, %v758
    %v808 = vmul.f32 %v761, %v761
    %v809 = vmul.f32 %v764, %v764
    %v810 = vmul.f32 %v767, %v767
    %v811 = vmul.f32 %v770, %v770
    %v812 = vmul.f32 %v773, %v773
    %v813 = vmul.f32 %v776, %v776
    %814 = vmatpush.msra.mxu0 %v813
    %815 = vmatpush.msra.mxu0 %v812
    %816 = vmatpush.msra.mxu0 %v811
    %817 = vmatpush.msra.mxu0 %v810
    %818 = vmatpush.msra.mxu0 %v809
    %819 = vmatpush.msra.mxu0 %v808
    %820 = vmatpush.msra.mxu0 %v807
    %821 = vmatpush.msra.mxu0 %v806
    %822 = vmatpush.msra.mxu0 %v805
    %823 = vmatpush.msra.mxu0 %v804
    %824 = vmatpush.msra.mxu0 %v803
    %825 = vmatpush.msra.mxu0 %v802
    %826 = vmatpush.msra.mxu0 %v801
    %827 = vmatpush.msra.mxu0 %v800
    %828 = vmatpush.msra.mxu0 %v799
    %829 = vmatpush.msra.mxu0 %v798
    %830 = vmatmul.f32.gmra.mxu0 1.0
    %v831 = vpop.f32.mrf.mxu0
    %v832 = vadd.f32 0.0, %v831
    %833 = vdwg.mxu0
    %v834 = vmul.f32 %v796, 0.0078125
    %v835 = vmul.f32 %v832, 0.0078125
    %v836 = vmul.f32 %v834, %v834
    %v837 = vsub.f32 %v835, %v836
    %v838 = vadd.f32 %v837, 1e-05
    %v839 = vrsqrt.pop %v838
    %v840 = vmul.f32 %v839, %v838
    %v841 = vmul.f32 %v840, %v839
    %v842 = vmul.f32 0.5, %v841
    %v843 = vsub.f32 1.5, %v842
    %v844 = vmul.f32 %v839, %v843
    %vm845 = vweird.f32 %v838
    %vm846 = vweird.f32 %v839
    %vm847 = vmor %vm845, %vm846
    %v848 = vsel %vm847, %v839, %v844
    %v849 = vmul.f32 %v210, %v848
    %v850 = vmul.f32 %v834, %v849
    %v851 = vsub.f32 %v211, %v850
    %v853 = vperm.slane %v849, 0
    %v855 = vmul.f32 %v731, %v853
    %v856 = vmul.f32 %v734, %v853
    %v857 = vmul.f32 %v737, %v853
    %v858 = vmul.f32 %v740, %v853
    %v859 = vmul.f32 %v743, %v853
    %v860 = vmul.f32 %v746, %v853
    %v861 = vmul.f32 %v749, %v853
    %v862 = vmul.f32 %v752, %v853
    %v863 = vmul.f32 %v755, %v853
    %v864 = vmul.f32 %v758, %v853
    %v865 = vmul.f32 %v761, %v853
    %v866 = vmul.f32 %v764, %v853
    %v867 = vmul.f32 %v767, %v853
    %v868 = vmul.f32 %v770, %v853
    %v869 = vmul.f32 %v773, %v853
    %v870 = vmul.f32 %v776, %v853
    %v872 = vperm.slane %v851, 0
    %v874 = vadd.f32 %v855, %v872
    %v875 = vadd.f32 %v856, %v872
    %v876 = vadd.f32 %v857, %v872
    %v877 = vadd.f32 %v858, %v872
    %v878 = vadd.f32 %v859, %v872
    %v879 = vadd.f32 %v860, %v872
    %v880 = vadd.f32 %v861, %v872
    %v881 = vadd.f32 %v862, %v872
    %v882 = vadd.f32 %v863, %v872
    %v883 = vadd.f32 %v864, %v872
    %v884 = vadd.f32 %v865, %v872
    %v885 = vadd.f32 %v866, %v872
    %v886 = vadd.f32 %v867, %v872
    %v887 = vadd.f32 %v868, %v872
    %v888 = vadd.f32 %v869, %v872
    %v889 = vadd.f32 %v870, %v872
    %v890 = vmax.f32 %v874, 0.0
    %v891 = vmax.f32 %v875, 0.0
    %v892 = vmax.f32 %v876, 0.0
    %v893 = vmax.f32 %v877, 0.0
    %v894 = vmax.f32 %v878, 0.0
    %v895 = vmax.f32 %v879, 0.0
    %v896 = vmax.f32 %v880, 0.0
    %v897 = vmax.f32 %v881, 0.0
    %v898 = vmax.f32 %v882, 0.0
    %v899 = vmax.f32 %v883, 0.0
    %v900 = vmax.f32 %v884, 0.0
    %v901 = vmax.f32 %v885, 0.0
    %v902 = vmax.f32 %v886, 0.0
    %v903 = vmax.f32 %v887, 0.0
    %v904 = vmax.f32 %v888, 0.0
    %v905 = vmax.f32 %v889, 0.0
    %v906 = vld [vmem:[%s7] sm:$0xff]
    %v907 = vld [vmem:[%s7 + $0x8] sm:$0x1]
    %v908 = vld [vmem:[%s8] sm:$0x1]
    %v909 = vld [vmem:[%s9] sm:$0xff]
    %v910 = vld [vmem:[%s10] sm:$0x1]
    %v911 = vld [vmem:[%s11] sm:$0x1]
    %v912 = vld [vmem:[%s12] sm:$0x1]
    %913 = vst.msk [vmem:[%s171 + $0x1] sm:$0xff] %vm160, %v890
    %914 = vst.msk [vmem:[%s171 + $0x11] sm:$0xff] %vm160, %v891
    %915 = vst.msk [vmem:[%s171 + $0x21] sm:$0xff] %vm160, %v892
    %916 = vst.msk [vmem:[%s171 + $0x31] sm:$0xff] %vm160, %v893
    %917 = vst.msk [vmem:[%s171 + $0x41] sm:$0xff] %vm160, %v894
    %918 = vst.msk [vmem:[%s171 + $0x51] sm:$0xff] %vm160, %v895
    %919 = vst.msk [vmem:[%s171 + $0x61] sm:$0xff] %vm160, %v896
    %920 = vst.msk [vmem:[%s171 + $0x71] sm:$0xff] %vm160, %v897
    %921 = vst.msk [vmem:[%s171 + $0xa1] sm:$0xff] %vm160, %v898
    %922 = vst.msk [vmem:[%s171 + $0xb1] sm:$0xff] %vm160, %v899
    %923 = vst.msk [vmem:[%s171 + $0xc1] sm:$0xff] %vm160, %v900
    %924 = vst.msk [vmem:[%s171 + $0xd1] sm:$0xff] %vm160, %v901
    %925 = vst.msk [vmem:[%s171 + $0xe1] sm:$0xff] %vm160, %v902
    %926 = vst.msk [vmem:[%s171 + $0xf1] sm:$0xff] %vm160, %v903
    %927 = vst.msk [vmem:[%s171 + $0x101] sm:$0xff] %vm160, %v904
    %928 = vst.msk [vmem:[%s171 + $0x111] sm:$0xff] %vm160, %v905
    %v929 = vperm.slane %v906, 4
    %v930 = vmul.f32 %v890, %v929
    %v931 = vmul.f32 %v891, %v929
    %v932 = vmul.f32 %v892, %v929
    %v933 = vmul.f32 %v893, %v929
    %v934 = vmul.f32 %v894, %v929
    %v935 = vmul.f32 %v895, %v929
    %v936 = vmul.f32 %v896, %v929
    %v937 = vmul.f32 %v897, %v929
    %v938 = vmul.f32 %v898, %v929
    %v939 = vmul.f32 %v899, %v929
    %v940 = vmul.f32 %v900, %v929
    %v941 = vmul.f32 %v901, %v929
    %v942 = vmul.f32 %v902, %v929
    %v943 = vmul.f32 %v903, %v929
    %v944 = vmul.f32 %v904, %v929
    %v945 = vmul.f32 %v905, %v929
    %v946 = vld [vmem:[#allocation2] sm:$0xff]
    %v947 = vld [vmem:[#allocation2 + $0x10] sm:$0xff]
    %v948 = vld [vmem:[#allocation2 + $0x20] sm:$0xff]
    %v949 = vld [vmem:[#allocation2 + $0x30] sm:$0xff]
    %v950 = vld [vmem:[#allocation2 + $0x40] sm:$0xff]
    %v951 = vld [vmem:[#allocation2 + $0x50] sm:$0xff]
    %v952 = vld [vmem:[#allocation2 + $0x60] sm:$0xff]
    %v953 = vld [vmem:[#allocation2 + $0x70] sm:$0xff]
    %v954 = vld [vmem:[#allocation2 + $0xa0] sm:$0xff]
    %v955 = vld [vmem:[#allocation2 + $0xb0] sm:$0xff]
    %v956 = vld [vmem:[#allocation2 + $0xc0] sm:$0xff]
    %v957 = vld [vmem:[#allocation2 + $0xd0] sm:$0xff]
    %v958 = vld [vmem:[#allocation2 + $0xe0] sm:$0xff]
    %v959 = vld [vmem:[#allocation2 + $0xf0] sm:$0xff]
    %v960 = vld [vmem:[#allocation2 + $0x100] sm:$0xff]
    %v961 = vld [vmem:[#allocation2 + $0x110] sm:$0xff]
    %v962 = vperm.slane %v906, 0
    %v963 = vmul.f32 %v946, %v962
    %v964 = vmul.f32 %v947, %v962
    %v965 = vmul.f32 %v948, %v962
    %v966 = vmul.f32 %v949, %v962
    %v967 = vmul.f32 %v950, %v962
    %v968 = vmul.f32 %v951, %v962
    %v969 = vmul.f32 %v952, %v962
    %v970 = vmul.f32 %v953, %v962
    %v971 = vmul.f32 %v954, %v962
    %v972 = vmul.f32 %v955, %v962
    %v973 = vmul.f32 %v956, %v962
    %v974 = vmul.f32 %v957, %v962
    %v975 = vmul.f32 %v958, %v962
    %v976 = vmul.f32 %v959, %v962
    %v977 = vmul.f32 %v960, %v962
    %v978 = vmul.f32 %v961, %v962
    %v979 = vadd.f32 %v930, %v963
    %v980 = vadd.f32 %v931, %v964
    %v981 = vadd.f32 %v932, %v965
    %v982 = vadd.f32 %v933, %v966
    %v983 = vadd.f32 %v934, %v967
    %v984 = vadd.f32 %v935, %v968
    %v985 = vadd.f32 %v936, %v969
    %v986 = vadd.f32 %v937, %v970
    %v987 = vadd.f32 %v938, %v971
    %v988 = vadd.f32 %v939, %v972
    %v989 = vadd.f32 %v940, %v973
    %v990 = vadd.f32 %v941, %v974
    %v991 = vadd.f32 %v942, %v975
    %v992 = vadd.f32 %v943, %v976
    %v993 = vadd.f32 %v944, %v977
    %v994 = vadd.f32 %v945, %v978
    %v995 = vld [vmem:[#allocation2 + $0x1] sm:$0xff]
    %v996 = vld [vmem:[#allocation2 + $0x11] sm:$0xff]
    %v997 = vld [vmem:[#allocation2 + $0x21] sm:$0xff]
    %v998 = vld [vmem:[#allocation2 + $0x31] sm:$0xff]
    %v999 = vld [vmem:[#allocation2 + $0x41] sm:$0xff]
    %v1000 = vld [vmem:[#allocation2 + $0x51] sm:$0xff]
    %v1001 = vld [vmem:[#allocation2 + $0x61] sm:$0xff]
    %v1002 = vld [vmem:[#allocation2 + $0x71] sm:$0xff]
    %v1003 = vld [vmem:[#allocation2 + $0xa1] sm:$0xff]
    %v1004 = vld [vmem:[#allocation2 + $0xb1] sm:$0xff]
    %v1005 = vld [vmem:[#allocation2 + $0xc1] sm:$0xff]
    %v1006 = vld [vmem:[#allocation2 + $0xd1] sm:$0xff]
    %v1007 = vld [vmem:[#allocation2 + $0xe1] sm:$0xff]
    %v1008 = vld [vmem:[#allocation2 + $0xf1] sm:$0xff]
    %v1009 = vld [vmem:[#allocation2 + $0x101] sm:$0xff]
    %v1010 = vld [vmem:[#allocation2 + $0x111] sm:$0xff]
    %v1011 = vperm.slane %v906, 1
    %v1012 = vmul.f32 %v995, %v1011
    %v1013 = vmul.f32 %v996, %v1011
    %v1014 = vmul.f32 %v997, %v1011
    %v1015 = vmul.f32 %v998, %v1011
    %v1016 = vmul.f32 %v999, %v1011
    %v1017 = vmul.f32 %v1000, %v1011
    %v1018 = vmul.f32 %v1001, %v1011
    %v1019 = vmul.f32 %v1002, %v1011
    %v1020 = vmul.f32 %v1003, %v1011
    %v1021 = vmul.f32 %v1004, %v1011
    %v1022 = vmul.f32 %v1005, %v1011
    %v1023 = vmul.f32 %v1006, %v1011
    %v1024 = vmul.f32 %v1007, %v1011
    %v1025 = vmul.f32 %v1008, %v1011
    %v1026 = vmul.f32 %v1009, %v1011
    %v1027 = vmul.f32 %v1010, %v1011
    %v1028 = vadd.f32 %v979, %v1012
    %v1029 = vadd.f32 %v980, %v1013
    %v1030 = vadd.f32 %v981, %v1014
    %v1031 = vadd.f32 %v982, %v1015
    %v1032 = vadd.f32 %v983, %v1016
    %v1033 = vadd.f32 %v984, %v1017
    %v1034 = vadd.f32 %v985, %v1018
    %v1035 = vadd.f32 %v986, %v1019
    %v1036 = vadd.f32 %v987, %v1020
    %v1037 = vadd.f32 %v988, %v1021
    %v1038 = vadd.f32 %v989, %v1022
    %v1039 = vadd.f32 %v990, %v1023
    %v1040 = vadd.f32 %v991, %v1024
    %v1041 = vadd.f32 %v992, %v1025
    %v1042 = vadd.f32 %v993, %v1026
    %v1043 = vadd.f32 %v994, %v1027
    %v1044 = vld [vmem:[#allocation2 + $0x2] sm:$0xff]
    %v1045 = vld [vmem:[#allocation2 + $0x12] sm:$0xff]
    %v1046 = vld [vmem:[#allocation2 + $0x22] sm:$0xff]
    %v1047 = vld [vmem:[#allocation2 + $0x32] sm:$0xff]
    %v1048 = vld [vmem:[#allocation2 + $0x42] sm:$0xff]
    %v1049 = vld [vmem:[#allocation2 + $0x52] sm:$0xff]
    %v1050 = vld [vmem:[#allocation2 + $0x62] sm:$0xff]
    %v1051 = vld [vmem:[#allocation2 + $0x72] sm:$0xff]
    %v1052 = vld [vmem:[#allocation2 + $0xa2] sm:$0xff]
    %v1053 = vld [vmem:[#allocation2 + $0xb2] sm:$0xff]
    %v1054 = vld [vmem:[#allocation2 + $0xc2] sm:$0xff]
    %v1055 = vld [vmem:[#allocation2 + $0xd2] sm:$0xff]
    %v1056 = vld [vmem:[#allocation2 + $0xe2] sm:$0xff]
    %v1057 = vld [vmem:[#allocation2 + $0xf2] sm:$0xff]
    %v1058 = vld [vmem:[#allocation2 + $0x102] sm:$0xff]
    %v1059 = vld [vmem:[#allocation2 + $0x112] sm:$0xff]
    %v1060 = vperm.slane %v906, 2
    %v1061 = vmul.f32 %v1044, %v1060
    %v1062 = vmul.f32 %v1045, %v1060
    %v1063 = vmul.f32 %v1046, %v1060
    %v1064 = vmul.f32 %v1047, %v1060
    %v1065 = vmul.f32 %v1048, %v1060
    %v1066 = vmul.f32 %v1049, %v1060
    %v1067 = vmul.f32 %v1050, %v1060
    %v1068 = vmul.f32 %v1051, %v1060
    %v1069 = vmul.f32 %v1052, %v1060
    %v1070 = vmul.f32 %v1053, %v1060
    %v1071 = vmul.f32 %v1054, %v1060
    %v1072 = vmul.f32 %v1055, %v1060
    %v1073 = vmul.f32 %v1056, %v1060
    %v1074 = vmul.f32 %v1057, %v1060
    %v1075 = vmul.f32 %v1058, %v1060
    %v1076 = vmul.f32 %v1059, %v1060
    %v1077 = vadd.f32 %v1028, %v1061
    %v1078 = vadd.f32 %v1029, %v1062
    %v1079 = vadd.f32 %v1030, %v1063
    %v1080 = vadd.f32 %v1031, %v1064
    %v1081 = vadd.f32 %v1032, %v1065
    %v1082 = vadd.f32 %v1033, %v1066
    %v1083 = vadd.f32 %v1034, %v1067
    %v1084 = vadd.f32 %v1035, %v1068
    %v1085 = vadd.f32 %v1036, %v1069
    %v1086 = vadd.f32 %v1037, %v1070
    %v1087 = vadd.f32 %v1038, %v1071
    %v1088 = vadd.f32 %v1039, %v1072
    %v1089 = vadd.f32 %v1040, %v1073
    %v1090 = vadd.f32 %v1041, %v1074
    %v1091 = vadd.f32 %v1042, %v1075
    %v1092 = vadd.f32 %v1043, %v1076
    %v1093 = vld [vmem:[%s171] sm:$0xff]
    %v1094 = vld [vmem:[%s171 + $0x10] sm:$0xff]
    %v1095 = vld [vmem:[%s171 + $0x20] sm:$0xff]
    %v1096 = vld [vmem:[%s171 + $0x30] sm:$0xff]
    %v1097 = vld [vmem:[%s171 + $0x40] sm:$0xff]
    %v1098 = vld [vmem:[%s171 + $0x50] sm:$0xff]
    %v1099 = vld [vmem:[%s171 + $0x60] sm:$0xff]
    %v1100 = vld [vmem:[%s171 + $0x70] sm:$0xff]
    %v1101 = vld [vmem:[%s171 + $0xa0] sm:$0xff]
    %v1102 = vld [vmem:[%s171 + $0xb0] sm:$0xff]
    %v1103 = vld [vmem:[%s171 + $0xc0] sm:$0xff]
    %v1104 = vld [vmem:[%s171 + $0xd0] sm:$0xff]
    %v1105 = vld [vmem:[%s171 + $0xe0] sm:$0xff]
    %v1106 = vld [vmem:[%s171 + $0xf0] sm:$0xff]
    %v1107 = vld [vmem:[%s171 + $0x100] sm:$0xff]
    %v1108 = vld [vmem:[%s171 + $0x110] sm:$0xff]
    %v1109 = vperm.slane %v906, 3
    %v1110 = vmul.f32 %v1093, %v1109
    %v1111 = vmul.f32 %v1094, %v1109
    %v1112 = vmul.f32 %v1095, %v1109
    %v1113 = vmul.f32 %v1096, %v1109
    %v1114 = vmul.f32 %v1097, %v1109
    %v1115 = vmul.f32 %v1098, %v1109
    %v1116 = vmul.f32 %v1099, %v1109
    %v1117 = vmul.f32 %v1100, %v1109
    %v1118 = vmul.f32 %v1101, %v1109
    %v1119 = vmul.f32 %v1102, %v1109
    %v1120 = vmul.f32 %v1103, %v1109
    %v1121 = vmul.f32 %v1104, %v1109
    %v1122 = vmul.f32 %v1105, %v1109
    %v1123 = vmul.f32 %v1106, %v1109
    %v1124 = vmul.f32 %v1107, %v1109
    %v1125 = vmul.f32 %v1108, %v1109
    %v1126 = vadd.f32 %v1077, %v1110
    %v1127 = vadd.f32 %v1078, %v1111
    %v1128 = vadd.f32 %v1079, %v1112
    %v1129 = vadd.f32 %v1080, %v1113
    %v1130 = vadd.f32 %v1081, %v1114
    %v1131 = vadd.f32 %v1082, %v1115
    %v1132 = vadd.f32 %v1083, %v1116
    %v1133 = vadd.f32 %v1084, %v1117
    %v1134 = vadd.f32 %v1085, %v1118
    %v1135 = vadd.f32 %v1086, %v1119
    %v1136 = vadd.f32 %v1087, %v1120
    %v1137 = vadd.f32 %v1088, %v1121
    %v1138 = vadd.f32 %v1089, %v1122
    %v1139 = vadd.f32 %v1090, %v1123
    %v1140 = vadd.f32 %v1091, %v1124
    %v1141 = vadd.f32 %v1092, %v1125
    %v1142 = vld [vmem:[%s171 + $0x2] sm:$0xff]
    %v1143 = vld [vmem:[%s171 + $0x12] sm:$0xff]
    %v1144 = vld [vmem:[%s171 + $0x22] sm:$0xff]
    %v1145 = vld [vmem:[%s171 + $0x32] sm:$0xff]
    %v1146 = vld [vmem:[%s171 + $0x42] sm:$0xff]
    %v1147 = vld [vmem:[%s171 + $0x52] sm:$0xff]
    %v1148 = vld [vmem:[%s171 + $0x62] sm:$0xff]
    %v1149 = vld [vmem:[%s171 + $0x72] sm:$0xff]
    %v1150 = vld [vmem:[%s171 + $0xa2] sm:$0xff]
    %v1151 = vld [vmem:[%s171 + $0xb2] sm:$0xff]
    %v1152 = vld [vmem:[%s171 + $0xc2] sm:$0xff]
    %v1153 = vld [vmem:[%s171 + $0xd2] sm:$0xff]
    %v1154 = vld [vmem:[%s171 + $0xe2] sm:$0xff]
    %v1155 = vld [vmem:[%s171 + $0xf2] sm:$0xff]
    %v1156 = vld [vmem:[%s171 + $0x102] sm:$0xff]
    %v1157 = vld [vmem:[%s171 + $0x112] sm:$0xff]
    %v1158 = vperm.slane %v906, 5
    %v1159 = vmul.f32 %v1142, %v1158
    %v1160 = vmul.f32 %v1143, %v1158
    %v1161 = vmul.f32 %v1144, %v1158
    %v1162 = vmul.f32 %v1145, %v1158
    %v1163 = vmul.f32 %v1146, %v1158
    %v1164 = vmul.f32 %v1147, %v1158
    %v1165 = vmul.f32 %v1148, %v1158
    %v1166 = vmul.f32 %v1149, %v1158
    %v1167 = vmul.f32 %v1150, %v1158
    %v1168 = vmul.f32 %v1151, %v1158
    %v1169 = vmul.f32 %v1152, %v1158
    %v1170 = vmul.f32 %v1153, %v1158
    %v1171 = vmul.f32 %v1154, %v1158
    %v1172 = vmul.f32 %v1155, %v1158
    %v1173 = vmul.f32 %v1156, %v1158
    %v1174 = vmul.f32 %v1157, %v1158
    %v1175 = vadd.f32 %v1126, %v1159
    %v1176 = vadd.f32 %v1127, %v1160
    %v1177 = vadd.f32 %v1128, %v1161
    %v1178 = vadd.f32 %v1129, %v1162
    %v1179 = vadd.f32 %v1130, %v1163
    %v1180 = vadd.f32 %v1131, %v1164
    %v1181 = vadd.f32 %v1132, %v1165
    %v1182 = vadd.f32 %v1133, %v1166
    %v1183 = vadd.f32 %v1134, %v1167
    %v1184 = vadd.f32 %v1135, %v1168
    %v1185 = vadd.f32 %v1136, %v1169
    %v1186 = vadd.f32 %v1137, %v1170
    %v1187 = vadd.f32 %v1138, %v1171
    %v1188 = vadd.f32 %v1139, %v1172
    %v1189 = vadd.f32 %v1140, %v1173
    %v1190 = vadd.f32 %v1141, %v1174
    %v1191 = vld [vmem:[%s491] sm:$0xff]
    %v1192 = vld [vmem:[%s491 + $0x10] sm:$0xff]
    %v1193 = vld [vmem:[%s491 + $0x20] sm:$0xff]
    %v1194 = vld [vmem:[%s491 + $0x30] sm:$0xff]
    %v1195 = vld [vmem:[%s491 + $0x40] sm:$0xff]
    %v1196 = vld [vmem:[%s491 + $0x50] sm:$0xff]
    %v1197 = vld [vmem:[%s491 + $0x60] sm:$0xff]
    %v1198 = vld [vmem:[%s491 + $0x70] sm:$0xff]
    %v1199 = vld [vmem:[%s491 + $0xa0] sm:$0xff]
    %v1200 = vld [vmem:[%s491 + $0xb0] sm:$0xff]
    %v1201 = vld [vmem:[%s491 + $0xc0] sm:$0xff]
    %v1202 = vld [vmem:[%s491 + $0xd0] sm:$0xff]
    %v1203 = vld [vmem:[%s491 + $0xe0] sm:$0xff]
    %v1204 = vld [vmem:[%s491 + $0xf0] sm:$0xff]
    %v1205 = vld [vmem:[%s491 + $0x100] sm:$0xff]
    %v1206 = vld [vmem:[%s491 + $0x110] sm:$0xff]
    %v1207 = vperm.slane %v906, 6
    %v1208 = vmul.f32 %v1191, %v1207
    %v1209 = vmul.f32 %v1192, %v1207
    %v1210 = vmul.f32 %v1193, %v1207
    %v1211 = vmul.f32 %v1194, %v1207
    %v1212 = vmul.f32 %v1195, %v1207
    %v1213 = vmul.f32 %v1196, %v1207
    %v1214 = vmul.f32 %v1197, %v1207
    %v1215 = vmul.f32 %v1198, %v1207
    %v1216 = vmul.f32 %v1199, %v1207
    %v1217 = vmul.f32 %v1200, %v1207
    %v1218 = vmul.f32 %v1201, %v1207
    %v1219 = vmul.f32 %v1202, %v1207
    %v1220 = vmul.f32 %v1203, %v1207
    %v1221 = vmul.f32 %v1204, %v1207
    %v1222 = vmul.f32 %v1205, %v1207
    %v1223 = vmul.f32 %v1206, %v1207
    %v1224 = vadd.f32 %v1175, %v1208
    %v1225 = vadd.f32 %v1176, %v1209
    %v1226 = vadd.f32 %v1177, %v1210
    %v1227 = vadd.f32 %v1178, %v1211
    %v1228 = vadd.f32 %v1179, %v1212
    %v1229 = vadd.f32 %v1180, %v1213
    %v1230 = vadd.f32 %v1181, %v1214
    %v1231 = vadd.f32 %v1182, %v1215
    %v1232 = vadd.f32 %v1183, %v1216
    %v1233 = vadd.f32 %v1184, %v1217
    %v1234 = vadd.f32 %v1185, %v1218
    %v1235 = vadd.f32 %v1186, %v1219
    %v1236 = vadd.f32 %v1187, %v1220
    %v1237 = vadd.f32 %v1188, %v1221
    %v1238 = vadd.f32 %v1189, %v1222
    %v1239 = vadd.f32 %v1190, %v1223
    %v1240 = vld [vmem:[%s491 + $0x1] sm:$0xff]
    %v1241 = vld [vmem:[%s491 + $0x11] sm:$0xff]
    %v1242 = vld [vmem:[%s491 + $0x21] sm:$0xff]
    %v1243 = vld [vmem:[%s491 + $0x31] sm:$0xff]
    %v1244 = vld [vmem:[%s491 + $0x41] sm:$0xff]
    %v1245 = vld [vmem:[%s491 + $0x51] sm:$0xff]
    %v1246 = vld [vmem:[%s491 + $0x61] sm:$0xff]
    %v1247 = vld [vmem:[%s491 + $0x71] sm:$0xff]
    %v1248 = vld [vmem:[%s491 + $0xa1] sm:$0xff]
    %v1249 = vld [vmem:[%s491 + $0xb1] sm:$0xff]
    %v1250 = vld [vmem:[%s491 + $0xc1] sm:$0xff]
    %v1251 = vld [vmem:[%s491 + $0xd1] sm:$0xff]
    %v1252 = vld [vmem:[%s491 + $0xe1] sm:$0xff]
    %v1253 = vld [vmem:[%s491 + $0xf1] sm:$0xff]
    %v1254 = vld [vmem:[%s491 + $0x101] sm:$0xff]
    %v1255 = vld [vmem:[%s491 + $0x111] sm:$0xff]
    %v1256 = vperm.slane %v906, 7
    %v1257 = vmul.f32 %v1240, %v1256
    %v1258 = vmul.f32 %v1241, %v1256
    %v1259 = vmul.f32 %v1242, %v1256
    %v1260 = vmul.f32 %v1243, %v1256
    %v1261 = vmul.f32 %v1244, %v1256
    %v1262 = vmul.f32 %v1245, %v1256
    %v1263 = vmul.f32 %v1246, %v1256
    %v1264 = vmul.f32 %v1247, %v1256
    %v1265 = vmul.f32 %v1248, %v1256
    %v1266 = vmul.f32 %v1249, %v1256
    %v1267 = vmul.f32 %v1250, %v1256
    %v1268 = vmul.f32 %v1251, %v1256
    %v1269 = vmul.f32 %v1252, %v1256
    %v1270 = vmul.f32 %v1253, %v1256
    %v1271 = vmul.f32 %v1254, %v1256
    %v1272 = vmul.f32 %v1255, %v1256
    %v1273 = vadd.f32 %v1224, %v1257
    %v1274 = vadd.f32 %v1225, %v1258
    %v1275 = vadd.f32 %v1226, %v1259
    %v1276 = vadd.f32 %v1227, %v1260
    %v1277 = vadd.f32 %v1228, %v1261
    %v1278 = vadd.f32 %v1229, %v1262
    %v1279 = vadd.f32 %v1230, %v1263
    %v1280 = vadd.f32 %v1231, %v1264
    %v1281 = vadd.f32 %v1232, %v1265
    %v1282 = vadd.f32 %v1233, %v1266
    %v1283 = vadd.f32 %v1234, %v1267
    %v1284 = vadd.f32 %v1235, %v1268
    %v1285 = vadd.f32 %v1236, %v1269
    %v1286 = vadd.f32 %v1237, %v1270
    %v1287 = vadd.f32 %v1238, %v1271
    %v1288 = vadd.f32 %v1239, %v1272
    %v1289 = vld [vmem:[%s491 + $0x2] sm:$0xff]
    %v1290 = vld [vmem:[%s491 + $0x12] sm:$0xff]
    %v1291 = vld [vmem:[%s491 + $0x22] sm:$0xff]
    %v1292 = vld [vmem:[%s491 + $0x32] sm:$0xff]
    %v1293 = vld [vmem:[%s491 + $0x42] sm:$0xff]
    %v1294 = vld [vmem:[%s491 + $0x52] sm:$0xff]
    %v1295 = vld [vmem:[%s491 + $0x62] sm:$0xff]
    %v1296 = vld [vmem:[%s491 + $0x72] sm:$0xff]
    %v1297 = vld [vmem:[%s491 + $0xa2] sm:$0xff]
    %v1298 = vld [vmem:[%s491 + $0xb2] sm:$0xff]
    %v1299 = vld [vmem:[%s491 + $0xc2] sm:$0xff]
    %v1300 = vld [vmem:[%s491 + $0xd2] sm:$0xff]
    %v1301 = vld [vmem:[%s491 + $0xe2] sm:$0xff]
    %v1302 = vld [vmem:[%s491 + $0xf2] sm:$0xff]
    %v1303 = vld [vmem:[%s491 + $0x102] sm:$0xff]
    %v1304 = vld [vmem:[%s491 + $0x112] sm:$0xff]
    %v1305 = vperm.slane %v907, 0
    %v1306 = vmul.f32 %v1289, %v1305
    %v1307 = vmul.f32 %v1290, %v1305
    %v1308 = vmul.f32 %v1291, %v1305
    %v1309 = vmul.f32 %v1292, %v1305
    %v1310 = vmul.f32 %v1293, %v1305
    %v1311 = vmul.f32 %v1294, %v1305
    %v1312 = vmul.f32 %v1295, %v1305
    %v1313 = vmul.f32 %v1296, %v1305
    %v1314 = vmul.f32 %v1297, %v1305
    %v1315 = vmul.f32 %v1298, %v1305
    %v1316 = vmul.f32 %v1299, %v1305
    %v1317 = vmul.f32 %v1300, %v1305
    %v1318 = vmul.f32 %v1301, %v1305
    %v1319 = vmul.f32 %v1302, %v1305
    %v1320 = vmul.f32 %v1303, %v1305
    %v1321 = vmul.f32 %v1304, %v1305
    %v1322 = vadd.f32 %v1273, %v1306
    %v1323 = vadd.f32 %v1274, %v1307
    %v1324 = vadd.f32 %v1275, %v1308
    %v1325 = vadd.f32 %v1276, %v1309
    %v1326 = vadd.f32 %v1277, %v1310
    %v1327 = vadd.f32 %v1278, %v1311
    %v1328 = vadd.f32 %v1279, %v1312
    %v1329 = vadd.f32 %v1280, %v1313
    %v1330 = vadd.f32 %v1281, %v1314
    %v1331 = vadd.f32 %v1282, %v1315
    %v1332 = vadd.f32 %v1283, %v1316
    %v1333 = vadd.f32 %v1284, %v1317
    %v1334 = vadd.f32 %v1285, %v1318
    %v1335 = vadd.f32 %v1286, %v1319
    %v1336 = vadd.f32 %v1287, %v1320
    %v1337 = vadd.f32 %v1288, %v1321
    %v1339 = vperm.slane %v908, 0
    %v1341 = vadd.f32 %v1322, %v1339
    %v1342 = vadd.f32 %v1323, %v1339
    %v1343 = vadd.f32 %v1324, %v1339
    %v1344 = vadd.f32 %v1325, %v1339
    %v1345 = vadd.f32 %v1326, %v1339
    %v1346 = vadd.f32 %v1327, %v1339
    %v1347 = vadd.f32 %v1328, %v1339
    %v1348 = vadd.f32 %v1329, %v1339
    %v1349 = vadd.f32 %v1330, %v1339
    %v1350 = vadd.f32 %v1331, %v1339
    %v1351 = vadd.f32 %v1332, %v1339
    %v1352 = vadd.f32 %v1333, %v1339
    %v1353 = vadd.f32 %v1334, %v1339
    %v1354 = vadd.f32 %v1335, %v1339
    %v1355 = vadd.f32 %v1336, %v1339
    %v1356 = vadd.f32 %v1337, %v1339
    %v1358 = vperm.slane %v910, 0
    %v1361 = vsel %vm160, %v1341, 0
    %v1364 = vsel %vm160, %v1342, 0
    %v1367 = vsel %vm160, %v1343, 0
    %v1370 = vsel %vm160, %v1344, 0
    %v1373 = vsel %vm160, %v1345, 0
    %v1376 = vsel %vm160, %v1346, 0
    %v1379 = vsel %vm160, %v1347, 0
    %v1382 = vsel %vm160, %v1348, 0
    %v1385 = vsel %vm160, %v1349, 0
    %v1388 = vsel %vm160, %v1350, 0
    %v1391 = vsel %vm160, %v1351, 0
    %v1394 = vsel %vm160, %v1352, 0
    %v1397 = vsel %vm160, %v1353, 0
    %v1400 = vsel %vm160, %v1354, 0
    %v1403 = vsel %vm160, %v1355, 0
    %v1406 = vsel %vm160, %v1356, 0
    %1408 = vmatpush.msra.mxu0 0.0
    %1409 = vmatpush.msra.mxu0 0.0
    %1410 = vmatpush.msra.mxu0 0.0
    %1411 = vmatpush.msra.mxu0 0.0
    %1412 = vmatpush.msra.mxu0 0.0
    %1413 = vmatpush.msra.mxu0 0.0
    %1414 = vmatpush.msra.mxu0 0.0
    %1415 = vmatpush.msra.mxu0 0.0
    %1416 = vmatpush.msra.mxu0 0.0
    %1417 = vmatpush.msra.mxu0 0.0
    %1418 = vmatpush.msra.mxu0 0.0
    %1419 = vmatpush.msra.mxu0 0.0
    %1420 = vmatpush.msra.mxu0 0.0
    %1421 = vmatpush.msra.mxu0 0.0
    %1422 = vmatpush.msra.mxu0 0.0
    %1423 = vmatpush.msra.mxu0 %v909
    %1424 = vmatmul.f32.gmra.mxu0 %v1361
    %v1425 = vpop.f32.mrf.mxu0
    %v1426 = vadd.f32 %v1358, %v1425
    %1427 = vmatmul.f32.gmra.mxu0 %v1364
    %v1428 = vpop.f32.mrf.mxu0
    %v1429 = vadd.f32 %v1358, %v1428
    %1430 = vmatmul.f32.gmra.mxu0 %v1367
    %v1431 = vpop.f32.mrf.mxu0
    %v1432 = vadd.f32 %v1358, %v1431
    %1433 = vmatmul.f32.gmra.mxu0 %v1370
    %v1434 = vpop.f32.mrf.mxu0
    %v1435 = vadd.f32 %v1358, %v1434
    %1436 = vmatmul.f32.gmra.mxu0 %v1373
    %v1437 = vpop.f32.mrf.mxu0
    %v1438 = vadd.f32 %v1358, %v1437
    %1439 = vmatmul.f32.gmra.mxu0 %v1376
    %v1440 = vpop.f32.mrf.mxu0
    %v1441 = vadd.f32 %v1358, %v1440
    %1442 = vmatmul.f32.gmra.mxu0 %v1379
    %v1443 = vpop.f32.mrf.mxu0
    %v1444 = vadd.f32 %v1358, %v1443
    %1445 = vmatmul.f32.gmra.mxu0 %v1382
    %v1446 = vpop.f32.mrf.mxu0
    %v1447 = vadd.f32 %v1358, %v1446
    %1448 = vmatmul.f32.gmra.mxu0 %v1385
    %v1449 = vpop.f32.mrf.mxu0
    %v1450 = vadd.f32 %v1358, %v1449
    %1451 = vmatmul.f32.gmra.mxu0 %v1388
    %v1452 = vpop.f32.mrf.mxu0
    %v1453 = vadd.f32 %v1358, %v1452
    %1454 = vmatmul.f32.gmra.mxu0 %v1391
    %v1455 = vpop.f32.mrf.mxu0
    %v1456 = vadd.f32 %v1358, %v1455
    %1457 = vmatmul.f32.gmra.mxu0 %v1394
    %v1458 = vpop.f32.mrf.mxu0
    %v1459 = vadd.f32 %v1358, %v1458
    %1460 = vmatmul.f32.gmra.mxu0 %v1397
    %v1461 = vpop.f32.mrf.mxu0
    %v1462 = vadd.f32 %v1358, %v1461
    %1463 = vmatmul.f32.gmra.mxu0 %v1400
    %v1464 = vpop.f32.mrf.mxu0
    %v1465 = vadd.f32 %v1358, %v1464
    %1466 = vmatmul.f32.gmra.mxu0 %v1403
    %v1467 = vpop.f32.mrf.mxu0
    %v1468 = vadd.f32 %v1358, %v1467
    %1469 = vmatmul.f32.gmra.mxu0 %v1406
    %v1470 = vpop.f32.mrf.mxu0
    %v1471 = vadd.f32 %v1358, %v1470
    %1472 = vdwg.mxu0
    %1473 = vmatpush.msra.mxu0 %v1471
    %1474 = vmatpush.msra.mxu0 %v1468
    %1475 = vmatpush.msra.mxu0 %v1465
    %1476 = vmatpush.msra.mxu0 %v1462
    %1477 = vmatpush.msra.mxu0 %v1459
    %1478 = vmatpush.msra.mxu0 %v1456
    %1479 = vmatpush.msra.mxu0 %v1453
    %1480 = vmatpush.msra.mxu0 %v1450
    %1481 = vmatpush.msra.mxu0 %v1447
    %1482 = vmatpush.msra.mxu0 %v1444
    %1483 = vmatpush.msra.mxu0 %v1441
    %1484 = vmatpush.msra.mxu0 %v1438
    %1485 = vmatpush.msra.mxu0 %v1435
    %1486 = vmatpush.msra.mxu0 %v1432
    %1487 = vmatpush.msra.mxu0 %v1429
    %1488 = vmatpush.msra.mxu0 %v1426
    %1489 = vmatmul.f32.gmra.mxu0 1.0
    %v1490 = vpop.f32.mrf.mxu0
    %v1491 = vadd.f32 0.0, %v1490
    %1492 = vdwg.mxu0
    %v1493 = vmul.f32 %v1426, %v1426
    %v1494 = vmul.f32 %v1429, %v1429
    %v1495 = vmul.f32 %v1432, %v1432
    %v1496 = vmul.f32 %v1435, %v1435
    %v1497 = vmul.f32 %v1438, %v1438
    %v1498 = vmul.f32 %v1441, %v1441
    %v1499 = vmul.f32 %v1444, %v1444
    %v1500 = vmul.f32 %v1447, %v1447
    %v1501 = vmul.f32 %v1450, %v1450
    %v1502 = vmul.f32 %v1453, %v1453
    %v1503 = vmul.f32 %v1456, %v1456
    %v1504 = vmul.f32 %v1459, %v1459
    %v1505 = vmul.f32 %v1462, %v1462
    %v1506 = vmul.f32 %v1465, %v1465
    %v1507 = vmul.f32 %v1468, %v1468
    %v1508 = vmul.f32 %v1471, %v1471
    %1509 = vmatpush.msra.mxu0 %v1508
    %1510 = vmatpush.msra.mxu0 %v1507
    %1511 = vmatpush.msra.mxu0 %v1506
    %1512 = vmatpush.msra.mxu0 %v1505
    %1513 = vmatpush.msra.mxu0 %v1504
    %1514 = vmatpush.msra.mxu0 %v1503
    %1515 = vmatpush.msra.mxu0 %v1502
    %1516 = vmatpush.msra.mxu0 %v1501
    %1517 = vmatpush.msra.mxu0 %v1500
    %1518 = vmatpush.msra.mxu0 %v1499
    %1519 = vmatpush.msra.mxu0 %v1498
    %1520 = vmatpush.msra.mxu0 %v1497
    %1521 = vmatpush.msra.mxu0 %v1496
    %1522 = vmatpush.msra.mxu0 %v1495
    %1523 = vmatpush.msra.mxu0 %v1494
    %1524 = vmatpush.msra.mxu0 %v1493
    %1525 = vmatmul.f32.gmra.mxu0 1.0
    %v1526 = vpop.f32.mrf.mxu0
    %v1527 = vadd.f32 0.0, %v1526
    %1528 = vdwg.mxu0
    %v1529 = vmul.f32 %v1491, 0.0078125
    %v1530 = vmul.f32 %v1527, 0.0078125
    %v1531 = vmul.f32 %v1529, %v1529
    %v1532 = vsub.f32 %v1530, %v1531
    %v1533 = vadd.f32 %v1532, 1e-05
    %v1534 = vrsqrt.pop %v1533
    %v1535 = vmul.f32 %v1534, %v1533
    %v1536 = vmul.f32 %v1535, %v1534
    %v1537 = vmul.f32 0.5, %v1536
    %v1538 = vsub.f32 1.5, %v1537
    %v1539 = vmul.f32 %v1534, %v1538
    %vm1540 = vweird.f32 %v1533
    %vm1541 = vweird.f32 %v1534
    %vm1542 = vmor %vm1540, %vm1541
    %v1543 = vsel %vm1542, %v1534, %v1539
    %v1544 = vmul.f32 %v911, %v1543
    %v1545 = vmul.f32 %v1529, %v1544
    %v1546 = vsub.f32 %v912, %v1545
    %v1548 = vperm.slane %v1544, 0
    %v1550 = vmul.f32 %v1426, %v1548
    %v1551 = vmul.f32 %v1429, %v1548
    %v1552 = vmul.f32 %v1432, %v1548
    %v1553 = vmul.f32 %v1435, %v1548
    %v1554 = vmul.f32 %v1438, %v1548
    %v1555 = vmul.f32 %v1441, %v1548
    %v1556 = vmul.f32 %v1444, %v1548
    %v1557 = vmul.f32 %v1447, %v1548
    %v1558 = vmul.f32 %v1450, %v1548
    %v1559 = vmul.f32 %v1453, %v1548
    %v1560 = vmul.f32 %v1456, %v1548
    %v1561 = vmul.f32 %v1459, %v1548
    %v1562 = vmul.f32 %v1462, %v1548
    %v1563 = vmul.f32 %v1465, %v1548
    %v1564 = vmul.f32 %v1468, %v1548
    %v1565 = vmul.f32 %v1471, %v1548
    %v1567 = vperm.slane %v1546, 0
    %v1569 = vadd.f32 %v1550, %v1567
    %v1570 = vadd.f32 %v1551, %v1567
    %v1571 = vadd.f32 %v1552, %v1567
    %v1572 = vadd.f32 %v1553, %v1567
    %v1573 = vadd.f32 %v1554, %v1567
    %v1574 = vadd.f32 %v1555, %v1567
    %v1575 = vadd.f32 %v1556, %v1567
    %v1576 = vadd.f32 %v1557, %v1567
    %v1577 = vadd.f32 %v1558, %v1567
    %v1578 = vadd.f32 %v1559, %v1567
    %v1579 = vadd.f32 %v1560, %v1567
    %v1580 = vadd.f32 %v1561, %v1567
    %v1581 = vadd.f32 %v1562, %v1567
    %v1582 = vadd.f32 %v1563, %v1567
    %v1583 = vadd.f32 %v1564, %v1567
    %v1584 = vadd.f32 %v1565, %v1567
    %v1585 = vmax.f32 %v1569, 0.0
    %v1586 = vmax.f32 %v1570, 0.0
    %v1587 = vmax.f32 %v1571, 0.0
    %v1588 = vmax.f32 %v1572, 0.0
    %v1589 = vmax.f32 %v1573, 0.0
    %v1590 = vmax.f32 %v1574, 0.0
    %v1591 = vmax.f32 %v1575, 0.0
    %v1592 = vmax.f32 %v1576, 0.0
    %v1593 = vmax.f32 %v1577, 0.0
    %v1594 = vmax.f32 %v1578, 0.0
    %v1595 = vmax.f32 %v1579, 0.0
    %v1596 = vmax.f32 %v1580, 0.0
    %v1597 = vmax.f32 %v1581, 0.0
    %v1598 = vmax.f32 %v1582, 0.0
    %v1599 = vmax.f32 %v1583, 0.0
    %v1600 = vmax.f32 %v1584, 0.0
    %1601 = vst.msk [vmem:[#allocation3] sm:$0xff] %vm160, %v1585
    %1602 = vst.msk [vmem:[#allocation3 + $0x8] sm:$0xff] %vm160, %v1586
    %1603 = vst.msk [vmem:[#allocation3 + $0x10] sm:$0xff] %vm160, %v1587
    %1604 = vst.msk [vmem:[#allocation3 + $0x18] sm:$0xff] %vm160, %v1588
    %1605 = vst.msk [vmem:[#allocation3 + $0x20] sm:$0xff] %vm160, %v1589
    %1606 = vst.msk [vmem:[#allocation3 + $0x28] sm:$0xff] %vm160, %v1590
    %1607 = vst.msk [vmem:[#allocation3 + $0x30] sm:$0xff] %vm160, %v1591
    %1608 = vst.msk [vmem:[#allocation3 + $0x38] sm:$0xff] %vm160, %v1592
    %1609 = vst.msk [vmem:[#allocation3 + $0x40] sm:$0xff] %vm160, %v1593
    %1610 = vst.msk [vmem:[#allocation3 + $0x48] sm:$0xff] %vm160, %v1594
    %1611 = vst.msk [vmem:[#allocation3 + $0x50] sm:$0xff] %vm160, %v1595
    %1612 = vst.msk [vmem:[#allocation3 + $0x58] sm:$0xff] %vm160, %v1596
    %1613 = vst.msk [vmem:[#allocation3 + $0x60] sm:$0xff] %vm160, %v1597
    %1614 = vst.msk [vmem:[#allocation3 + $0x68] sm:$0xff] %vm160, %v1598
    %1615 = vst.msk [vmem:[#allocation3 + $0x70] sm:$0xff] %vm160, %v1599
    %1616 = vst.msk [vmem:[#allocation3 + $0x78] sm:$0xff] %vm160, %v1600
    // Predicated region
    $region54: #{tpu_custom_call.1} parent=1 // pred_check
      _
    $region55: #{tpu_custom_call.1} parent=1 // pred_check_branch
      %1618 = sbr.rel (0) target = $region57
    $region56: #{tpu_custom_call.1} parent=1 // pred_region
      %1620 = vsyncadd [#allocation4], 0
      %s1621 = sshll.u32 [#allocation3], 4
      %s1622 = int_to_ptr.vmem [resolvable:$true] %s1621
      %s1623 = sshll.u32 %s13, 4
      %s1624 = int_to_ptr.hbm [resolvable:$true] %s1623
      %1629 = dma.vmem_to_hbm [thread:$0]  %s1622, 2048, %s1624, [#allocation4], 128, 128, 8
    $region57: #{tpu_custom_call.1} parent=1 // pred_fallthru
      _
    // Predicated region
    $region58: #{tpu_custom_call.1} parent=1 // pred_check
      _
    $region59: #{tpu_custom_call.1} parent=1 // pred_check_branch
      %1631 = sbr.rel (0) target = $region61
    $region60: #{tpu_custom_call.1} parent=1 // pred_region
      %1633 = dma.done [#allocation4], 2048
    $region61: #{tpu_custom_call.1} parent=1 // pred_fallthru
      _
    %1634 = vsyncpa [#allocation4], 1

</llo_original>
